<compile_context>
chip_gen: v5e
topology: v5e:2x2
jax: 0.10.0
libtpu: 0.0.40
codegen_flags: <defaults>
</compile_context>

<pallas_src>
import numpy as np
import jax
import jax.numpy as jnp
from jax.experimental import pallas as pl
from jax.experimental.pallas import tpu as pltpu

INIT_MEAN = 0.3          # matches init_mean in the PyTorch script
NUM_ITERATIONS = 3
EPS = 1e-7               # same clip strength as the original atanh-argument clip
TINY = 1e-12             # magnitude floors (tanh underflow / zero denominator)
RATIO_MAX = (2.0 - EPS) / EPS     # clip p to [-1+EPS, 1-EPS]  <=>  clip ratio here
RATIO_MIN = EPS / (2.0 - EPS)


def _tree_product_leading(x):
    """Balanced product over axis 0: depth ceil(log2 n), pairwise independent
    slab multiplies (4 VALU slots usable) instead of a serial chain."""
    n = x.shape[0]
    np2 = 1 << (n - 1).bit_length()          # pad to power of two with the identity
    if np2 != n:
        x = jnp.concatenate([x, jnp.ones((np2 - n,) + x.shape[1:], x.dtype)], axis=0)
    while x.shape[0] > 1:
        h = x.shape[0] // 2
        x = x[:h] * x[h:]
    return x[0]


def nsp_kernel(llr_ref, h_ref, vw_ref, cw_ref, out_ref):
    """One batch tile of BP, unrolled over NUM_ITERATIONS.

    Layout: batch on lanes (lane-dense), checks on sublanes, vars leading.
      llr_ref : (N, TB)       channel LLRs (variables x batch tile)
      h_ref   : (N, M, 1)     {0,1} parity-check mask (M on sublanes)
      vw_ref  : (T, N, M, 1)  per-iteration vnode weights, pre-masked by H
      cw_ref  : (T, N, M, 1)  per-iteration cnode weights, pre-masked by H
      out_ref : (T, N, TB)    soft output of every iteration
    """
    N, M, _ = h_ref.shape
    TB = llr_ref.shape[-1]
    T = out_ref.shape[0]

    llr = llr_ref[...]                                             # (N, TB)
    # Hoisted broadcasts (JAX does not CSE broadcast_in_dim inside the loop).
    llr_e = jnp.broadcast_to(llr[:, None, :], (N, M, TB))          # scattered llr
    on = jnp.broadcast_to(h_ref[...], (N, M, TB)) > 0.0            # edge mask (lane splat)

    col_sum = None       # per-variable sum of check->var messages (reused gather)
    extrinsic = None     # check->var messages, off-edge entries exactly 0

    for i in range(T):                                             # static unroll (T small)
        # ---- variable node: leave-one-out sum over checks (sublane axis) ----
        if i == 0:
            # Peeled: extrinsic == 0  =>  a_priori == 0  =>  a == scattered llr.
            a = llr_e
        else:
            # vnode weights are pre-masked by H (off-edge entries are zeroed).
            a = (col_sum[:, None, :] - extrinsic) * vw_ref[i] + llr_e

        # ---- check node: leave-one-out tanh product over variables ----
        t = jnp.tanh(0.5 * a)
        mag = jnp.maximum(jnp.abs(t), TINY)                        # keep sign, avoid exact 0
        t_safe = jnp.where(on, jnp.where(t >= 0.0, mag, -mag), 1.0)  # off-edge -> identity

        prod = _tree_product_leading(t_safe)                       # (M, TB)

        # 2*atanh(prod/t) = log((t + prod) / (t - prod)); clip the ratio to the
        # same bound as clipping p to [-1+EPS, 1-EPS] (keeps ext finite even at
        # a floored / zero denominator).
        num = t_safe + prod[None, :, :]
        den = t_safe - prod[None, :, :]
        den_mag = jnp.maximum(jnp.abs(den), TINY)
        den_safe = jnp.where(den >= 0.0, den_mag, -den_mag)
        ratio = jnp.clip(num * pl.reciprocal(den_safe, approx=True),
                         RATIO_MIN, RATIO_MAX)
        ext = jnp.log(ratio)

        # cnode weights are pre-masked by H -> off-edge messages are exactly 0.
        extrinsic = ext * cw_ref[i]                                # (N, M, TB)

        # ---- gather + llr; the gather doubles as the next col_sum ----
        gather = jnp.sum(extrinsic, axis=1)                        # (N, TB)
        out_ref[i] = gather + llr                                  # lane-dense store
        col_sum = gather


def neural_sum_product(llr, H, vnode_w, cnode_w, *, batch_block=128):
    """llr: (B, N); H: (M, N); vnode_w/cnode_w: (T, M, N).
    Returns a list (length T) of (B, N) soft outputs, one per BP iteration,
    mirroring the PyTorch module's list-of-tensors return value."""
    B, N = llr.shape
    T, M, _ = vnode_w.shape
    if B % batch_block != 0:
        raise ValueError("batch size must be a multiple of batch_block")

    # Lane-dense layout: batch on lanes; M on sublanes with a trailing size-1
    # lane dim so the kernel's per-iteration weight broadcast is a lane splat.
    llr_t = llr.T                                               # (N, B)
    h_nm1 = H.T[:, :, None]                                     # (N, M, 1)
    vw = jnp.transpose(vnode_w * H[None], (0, 2, 1))[..., None]  # (T, N, M, 1), pre-masked
    cw = jnp.transpose(cnode_w * H[None], (0, 2, 1))[..., None]  # (T, N, M, 1), pre-masked

    grid = (B // batch_block,)          # >= 2 "parallel" tiles keeps v7x megacore fed
    out = pl.pallas_call(
        nsp_kernel,
        out_shape=jax.ShapeDtypeStruct((T, N, B), jnp.float32),
        grid=grid,
        in_specs=[
            pl.BlockSpec((N, batch_block), lambda b: (0, b)),        # llr: tiled over batch
            pl.BlockSpec((N, M, 1), lambda b: (0, 0, 0)),            # H mask: grid-invariant
            pl.BlockSpec((T, N, M, 1), lambda b: (0, 0, 0, 0)),      # vnode weights
            pl.BlockSpec((T, N, M, 1), lambda b: (0, 0, 0, 0)),      # cnode weights
        ],
        out_specs=pl.BlockSpec((T, N, batch_block), lambda b: (0, 0, b)),
        compiler_params=pltpu.CompilerParams(
            dimension_semantics=("parallel",)),
    )(llr_t, h_nm1, vw, cw)

    # Back to the PyTorch layout: list of (B, N).
    return [out[i].T for i in range(T)]


def _reference_forward(llr, H, vnode_w, cnode_w):
    """Pure-JAX dense reference with exact math (mirrors the torch module)."""
    B, N = llr.shape
    M = H.shape[0]
    T = vnode_w.shape[0]
    Hb = H[None]                                              # (1, M, N)
    scattered = jnp.broadcast_to(llr[:, None, :], (B, M, N))
    ext = jnp.zeros((B, M, N), jnp.float32)
    outs = []
    for i in range(T):
        col = jnp.sum(ext, axis=1, keepdims=True)
        a = (col - ext) * vnode_w[i][None] * Hb + scattered
        t = jnp.tanh(0.5 * a)
        t_safe = jnp.where(Hb > 0, t, 1.0)
        prod = jnp.prod(t_safe, axis=2, keepdims=True)
        p = jnp.clip(prod / t_safe, -1.0 + EPS, 1.0 - EPS)
        ext = jnp.log((1.0 + p) / (1.0 - p)) * cnode_w[i][None] * Hb
        outs.append(jnp.sum(ext, axis=1) + llr)
    return outs


if __name__ == "__main__":
    B, M, N, T = 256, 8, 16, NUM_ITERATIONS   # batch, checks, variables, iterations

    # Deterministic regular-ish parity-check matrix (degree-4 checks, {0,1}).
    h_np = np.zeros((M, N), np.float32)
    for m in range(M):
        for j in range(4):
            h_np[m, (3 * m + 5 * j) % N] = 1.0
    H = jnp.asarray(h_np)

    key = jax.random.PRNGKey(0)
    k_llr, k_v, k_c = jax.random.split(key, 3)
    llr = 2.0 * jax.random.normal(k_llr, (B, N), jnp.float32)

    # MessageNormalizer weights: one per edge per iteration, init around 0.3.
    vnode_w = INIT_MEAN + 0.02 * jax.random.normal(k_v, (T, M, N), jnp.float32)
    cnode_w = INIT_MEAN + 0.02 * jax.random.normal(k_c, (T, M, N), jnp.float32)

    outs = neural_sum_product(llr, H, vnode_w, cnode_w, batch_block=128)
    outs = jax.block_until_ready(outs)

    assert len(outs) == T
    assert all(o.shape == (B, N) for o in outs)
    assert all(bool(jnp.all(jnp.isfinite(o))) for o in outs)

    # Tolerance check against an exact-math reference (approx reciprocal in the
    # kernel contributes ~2^-12 relative error on the atanh ratio per iteration).
    refs = jax.block_until_ready(_reference_forward(llr, H, vnode_w, cnode_w))
    for o, r in zip(outs, refs):
        err = float(jnp.max(jnp.abs(o - r)))
        assert err < 5e-2, f"mismatch vs reference: {err}"

    print("KERNEL_OK")
</pallas_src>

<mosaic_0001>
module attributes {stable_mosaic.version = 11 : i64} {
  func.func @nsp_kernel(%arg0: i32, %arg1: memref<16x128xf32, #tpu.memory_space<vmem>>, %arg2: memref<16x8x1xf32, #tpu.memory_space<vmem>>, %arg3: memref<3x16x8x1xf32, #tpu.memory_space<vmem>>, %arg4: memref<3x16x8x1xf32, #tpu.memory_space<vmem>>, %arg5: memref<3x16x128xf32, #tpu.memory_space<vmem>>) attributes {dimension_semantics = [#tpu.dimension_semantics<parallel>], iteration_bounds = array<i64: 2>, scalar_prefetch = 0 : i64, scratch_operands = 0 : i64, tpu.core_type = #tpu.core_type<tc>, window_params = [{transform_indices = @transform_0, window_bounds = array<i64: 16, 128>}, {pipeline_mode = #tpu.pipeline_mode<synchronous>, transform_indices = @transform_1, window_bounds = array<i64: 16, 8, 1>}, {pipeline_mode = #tpu.pipeline_mode<synchronous>, transform_indices = @transform_2, window_bounds = array<i64: 3, 16, 8, 1>}, {pipeline_mode = #tpu.pipeline_mode<synchronous>, transform_indices = @transform_3, window_bounds = array<i64: 3, 16, 8, 1>}, {transform_indices = @transform_4, window_bounds = array<i64: 3, 16, 128>}]} {
    %c0 = arith.constant 0 : index
    %c0_0 = arith.constant 0 : index
    %0 = vector.load %arg1[%c0, %c0_0] : memref<16x128xf32, #tpu.memory_space<vmem>>, vector<16x128xf32>
    %1 = vector.shape_cast %0 : vector<16x128xf32> to vector<16x1x128xf32>
    %2 = vector.shape_cast %1 : vector<16x1x128xf32> to vector<16x1x128xf32>
    %3 = vector.broadcast %2 : vector<16x1x128xf32> to vector<16x8x128xf32>
    %c0_1 = arith.constant 0 : index
    %c0_2 = arith.constant 0 : index
    %c0_3 = arith.constant 0 : index
    %4 = vector.load %arg2[%c0_1, %c0_2, %c0_3] : memref<16x8x1xf32, #tpu.memory_space<vmem>>, vector<16x8x1xf32>
    %5 = vector.shape_cast %4 : vector<16x8x1xf32> to vector<16x8x1xf32>
    %6 = vector.broadcast %5 : vector<16x8x1xf32> to vector<16x8x128xf32>
    %cst = arith.constant 0.000000e+00 : f32
    %7 = vector.broadcast %cst : f32 to vector<16x8x128xf32>
    %8 = arith.cmpf ogt, %6, %7 : vector<16x8x128xf32>
    %cst_4 = arith.constant 5.000000e-01 : f32
    %9 = vector.broadcast %cst_4 : f32 to vector<16x8x128xf32>
    %10 = arith.mulf %9, %3 : vector<16x8x128xf32>
    %11 = math.tanh %10 : vector<16x8x128xf32>
    %12 = math.absf %11 : vector<16x8x128xf32>
    %cst_5 = arith.constant 9.99999996E-13 : f32
    %13 = vector.broadcast %cst_5 : f32 to vector<16x8x128xf32>
    %14 = arith.maximumf %12, %13 : vector<16x8x128xf32>
    %cst_6 = arith.constant 0.000000e+00 : f32
    %15 = vector.broadcast %cst_6 : f32 to vector<16x8x128xf32>
    %16 = arith.cmpf oge, %11, %15 : vector<16x8x128xf32>
    %cst_7 = arith.constant 0.000000e+00 : f32
    %17 = vector.broadcast %cst_7 : f32 to vector<16x8x128xf32>
    %18 = arith.subf %17, %14 : vector<16x8x128xf32>
    %19 = arith.select %16, %14, %18 : vector<16x8x128xi1>, vector<16x8x128xf32>
    %cst_8 = arith.constant 1.000000e+00 : f32
    %20 = vector.broadcast %cst_8 : f32 to vector<16x8x128xf32>
    %21 = arith.select %8, %19, %20 : vector<16x8x128xi1>, vector<16x8x128xf32>
    %22 = vector.extract_strided_slice %21 {offsets = [0, 0, 0], sizes = [8, 8, 128], strides = [1, 1, 1]} : vector<16x8x128xf32> to vector<8x8x128xf32>
    %23 = vector.extract_strided_slice %21 {offsets = [8, 0, 0], sizes = [8, 8, 128], strides = [1, 1, 1]} : vector<16x8x128xf32> to vector<8x8x128xf32>
    %24 = arith.mulf %22, %23 : vector<8x8x128xf32>
    %25 = vector.extract_strided_slice %24 {offsets = [0, 0, 0], sizes = [4, 8, 128], strides = [1, 1, 1]} : vector<8x8x128xf32> to vector<4x8x128xf32>
    %26 = vector.extract_strided_slice %24 {offsets = [4, 0, 0], sizes = [4, 8, 128], strides = [1, 1, 1]} : vector<8x8x128xf32> to vector<4x8x128xf32>
    %27 = arith.mulf %25, %26 : vector<4x8x128xf32>
    %28 = vector.extract_strided_slice %27 {offsets = [0, 0, 0], sizes = [2, 8, 128], strides = [1, 1, 1]} : vector<4x8x128xf32> to vector<2x8x128xf32>
    %29 = vector.extract_strided_slice %27 {offsets = [2, 0, 0], sizes = [2, 8, 128], strides = [1, 1, 1]} : vector<4x8x128xf32> to vector<2x8x128xf32>
    %30 = arith.mulf %28, %29 : vector<2x8x128xf32>
    %31 = vector.extract_strided_slice %30 {offsets = [0, 0, 0], sizes = [1, 8, 128], strides = [1, 1, 1]} : vector<2x8x128xf32> to vector<1x8x128xf32>
    %32 = vector.extract_strided_slice %30 {offsets = [1, 0, 0], sizes = [1, 8, 128], strides = [1, 1, 1]} : vector<2x8x128xf32> to vector<1x8x128xf32>
    %33 = arith.mulf %31, %32 : vector<1x8x128xf32>
    %34 = vector.shape_cast %33 : vector<1x8x128xf32> to vector<8x128xf32>
    %35 = vector.shape_cast %34 : vector<8x128xf32> to vector<1x8x128xf32>
    %36 = vector.broadcast %35 : vector<1x8x128xf32> to vector<16x8x128xf32>
    %37 = arith.addf %21, %36 : vector<16x8x128xf32>
    %38 = vector.shape_cast %34 : vector<8x128xf32> to vector<1x8x128xf32>
    %39 = vector.broadcast %38 : vector<1x8x128xf32> to vector<16x8x128xf32>
    %40 = arith.subf %21, %39 : vector<16x8x128xf32>
    %41 = math.absf %40 : vector<16x8x128xf32>
    %cst_9 = arith.constant 9.99999996E-13 : f32
    %42 = vector.broadcast %cst_9 : f32 to vector<16x8x128xf32>
    %43 = arith.maximumf %41, %42 : vector<16x8x128xf32>
    %cst_10 = arith.constant 0.000000e+00 : f32
    %44 = vector.broadcast %cst_10 : f32 to vector<16x8x128xf32>
    %45 = arith.cmpf oge, %40, %44 : vector<16x8x128xf32>
    %cst_11 = arith.constant 0.000000e+00 : f32
    %46 = vector.broadcast %cst_11 : f32 to vector<16x8x128xf32>
    %47 = arith.subf %46, %43 : vector<16x8x128xf32>
    %48 = arith.select %45, %43, %47 : vector<16x8x128xi1>, vector<16x8x128xf32>
    %49 = tpu.reciprocal %48 {approx = true} : vector<16x8x128xf32> -> vector<16x8x128xf32>
    %50 = arith.mulf %37, %49 : vector<16x8x128xf32>
    %cst_12 = arith.constant 5.00000041E-8 : f32
    %cst_13 = arith.constant 2.000000e+07 : f32
    %51 = vector.broadcast %cst_12 : f32 to vector<16x8x128xf32>
    %52 = arith.maximumf %51, %50 : vector<16x8x128xf32>
    %53 = vector.broadcast %cst_13 : f32 to vector<16x8x128xf32>
    %54 = arith.minimumf %53, %52 : vector<16x8x128xf32>
    %55 = math.log %54 : vector<16x8x128xf32>
    %c0_14 = arith.constant 0 : index
    %c0_15 = arith.constant 0 : index
    %c0_16 = arith.constant 0 : index
    %c0_17 = arith.constant 0 : index
    %56 = vector.load %arg4[%c0_14, %c0_15, %c0_16, %c0_17] : memref<3x16x8x1xf32, #tpu.memory_space<vmem>>, vector<1x16x8x1xf32>
    %57 = vector.shape_cast %56 : vector<1x16x8x1xf32> to vector<16x8x1xf32>
    %58 = vector.broadcast %57 : vector<16x8x1xf32> to vector<16x8x128xf32>
    %59 = arith.mulf %55, %58 : vector<16x8x128xf32>
    %cst_18 = arith.constant dense<0.000000e+00> : vector<16x128xf32>
    %60 = vector.multi_reduction <add>, %59, %cst_18 [1] : vector<16x8x128xf32> to vector<16x128xf32>
    %61 = arith.addf %60, %0 : vector<16x128xf32>
    %c0_19 = arith.constant 0 : index
    %c0_20 = arith.constant 0 : index
    %c0_21 = arith.constant 0 : index
    %62 = vector.load %arg5[%c0_19, %c0_20, %c0_21] : memref<3x16x128xf32, #tpu.memory_space<vmem>>, vector<1x16x128xf32>
    %63 = vector.shape_cast %62 : vector<1x16x128xf32> to vector<16x128xf32>
    %64 = vector.shape_cast %61 : vector<16x128xf32> to vector<1x16x128xf32>
    tpu.vector_store %arg5[%c0_19, %c0_20, %c0_21], %64 {strides = array<i32>} : memref<3x16x128xf32, #tpu.memory_space<vmem>>, vector<1x16x128xf32>,
    %65 = vector.shape_cast %60 : vector<16x128xf32> to vector<16x1x128xf32>
    %66 = vector.broadcast %65 : vector<16x1x128xf32> to vector<16x8x128xf32>
    %67 = arith.subf %66, %59 : vector<16x8x128xf32>
    %c1 = arith.constant 1 : index
    %c0_22 = arith.constant 0 : index
    %c0_23 = arith.constant 0 : index
    %c0_24 = arith.constant 0 : index
    %68 = vector.load %arg3[%c1, %c0_22, %c0_23, %c0_24] : memref<3x16x8x1xf32, #tpu.memory_space<vmem>>, vector<1x16x8x1xf32>
    %69 = vector.shape_cast %68 : vector<1x16x8x1xf32> to vector<16x8x1xf32>
    %70 = vector.broadcast %69 : vector<16x8x1xf32> to vector<16x8x128xf32>
    %71 = arith.mulf %67, %70 : vector<16x8x128xf32>
    %72 = arith.addf %71, %3 : vector<16x8x128xf32>
    %cst_25 = arith.constant 5.000000e-01 : f32
    %73 = vector.broadcast %cst_25 : f32 to vector<16x8x128xf32>
    %74 = arith.mulf %73, %72 : vector<16x8x128xf32>
    %75 = math.tanh %74 : vector<16x8x128xf32>
    %76 = math.absf %75 : vector<16x8x128xf32>
    %cst_26 = arith.constant 9.99999996E-13 : f32
    %77 = vector.broadcast %cst_26 : f32 to vector<16x8x128xf32>
    %78 = arith.maximumf %76, %77 : vector<16x8x128xf32>
    %cst_27 = arith.constant 0.000000e+00 : f32
    %79 = vector.broadcast %cst_27 : f32 to vector<16x8x128xf32>
    %80 = arith.cmpf oge, %75, %79 : vector<16x8x128xf32>
    %cst_28 = arith.constant 0.000000e+00 : f32
    %81 = vector.broadcast %cst_28 : f32 to vector<16x8x128xf32>
    %82 = arith.subf %81, %78 : vector<16x8x128xf32>
    %83 = arith.select %80, %78, %82 : vector<16x8x128xi1>, vector<16x8x128xf32>
    %cst_29 = arith.constant 1.000000e+00 : f32
    %84 = vector.broadcast %cst_29 : f32 to vector<16x8x128xf32>
    %85 = arith.select %8, %83, %84 : vector<16x8x128xi1>, vector<16x8x128xf32>
    %86 = vector.extract_strided_slice %85 {offsets = [0, 0, 0], sizes = [8, 8, 128], strides = [1, 1, 1]} : vector<16x8x128xf32> to vector<8x8x128xf32>
    %87 = vector.extract_strided_slice %85 {offsets = [8, 0, 0], sizes = [8, 8, 128], strides = [1, 1, 1]} : vector<16x8x128xf32> to vector<8x8x128xf32>
    %88 = arith.mulf %86, %87 : vector<8x8x128xf32>
    %89 = vector.extract_strided_slice %88 {offsets = [0, 0, 0], sizes = [4, 8, 128], strides = [1, 1, 1]} : vector<8x8x128xf32> to vector<4x8x128xf32>
    %90 = vector.extract_strided_slice %88 {offsets = [4, 0, 0], sizes = [4, 8, 128], strides = [1, 1, 1]} : vector<8x8x128xf32> to vector<4x8x128xf32>
    %91 = arith.mulf %89, %90 : vector<4x8x128xf32>
    %92 = vector.extract_strided_slice %91 {offsets = [0, 0, 0], sizes = [2, 8, 128], strides = [1, 1, 1]} : vector<4x8x128xf32> to vector<2x8x128xf32>
    %93 = vector.extract_strided_slice %91 {offsets = [2, 0, 0], sizes = [2, 8, 128], strides = [1, 1, 1]} : vector<4x8x128xf32> to vector<2x8x128xf32>
    %94 = arith.mulf %92, %93 : vector<2x8x128xf32>
    %95 = vector.extract_strided_slice %94 {offsets = [0, 0, 0], sizes = [1, 8, 128], strides = [1, 1, 1]} : vector<2x8x128xf32> to vector<1x8x128xf32>
    %96 = vector.extract_strided_slice %94 {offsets = [1, 0, 0], sizes = [1, 8, 128], strides = [1, 1, 1]} : vector<2x8x128xf32> to vector<1x8x128xf32>
    %97 = arith.mulf %95, %96 : vector<1x8x128xf32>
    %98 = vector.shape_cast %97 : vector<1x8x128xf32> to vector<8x128xf32>
    %99 = vector.shape_cast %98 : vector<8x128xf32> to vector<1x8x128xf32>
    %100 = vector.broadcast %99 : vector<1x8x128xf32> to vector<16x8x128xf32>
    %101 = arith.addf %85, %100 : vector<16x8x128xf32>
    %102 = vector.shape_cast %98 : vector<8x128xf32> to vector<1x8x128xf32>
    %103 = vector.broadcast %102 : vector<1x8x128xf32> to vector<16x8x128xf32>
    %104 = arith.subf %85, %103 : vector<16x8x128xf32>
    %105 = math.absf %104 : vector<16x8x128xf32>
    %cst_30 = arith.constant 9.99999996E-13 : f32
    %106 = vector.broadcast %cst_30 : f32 to vector<16x8x128xf32>
    %107 = arith.maximumf %105, %106 : vector<16x8x128xf32>
    %cst_31 = arith.constant 0.000000e+00 : f32
    %108 = vector.broadcast %cst_31 : f32 to vector<16x8x128xf32>
    %109 = arith.cmpf oge, %104, %108 : vector<16x8x128xf32>
    %cst_32 = arith.constant 0.000000e+00 : f32
    %110 = vector.broadcast %cst_32 : f32 to vector<16x8x128xf32>
    %111 = arith.subf %110, %107 : vector<16x8x128xf32>
    %112 = arith.select %109, %107, %111 : vector<16x8x128xi1>, vector<16x8x128xf32>
    %113 = tpu.reciprocal %112 {approx = true} : vector<16x8x128xf32> -> vector<16x8x128xf32>
    %114 = arith.mulf %101, %113 : vector<16x8x128xf32>
    %cst_33 = arith.constant 5.00000041E-8 : f32
    %cst_34 = arith.constant 2.000000e+07 : f32
    %115 = vector.broadcast %cst_33 : f32 to vector<16x8x128xf32>
    %116 = arith.maximumf %115, %114 : vector<16x8x128xf32>
    %117 = vector.broadcast %cst_34 : f32 to vector<16x8x128xf32>
    %118 = arith.minimumf %117, %116 : vector<16x8x128xf32>
    %119 = math.log %118 : vector<16x8x128xf32>
    %c1_35 = arith.constant 1 : index
    %c0_36 = arith.constant 0 : index
    %c0_37 = arith.constant 0 : index
    %c0_38 = arith.constant 0 : index
    %120 = vector.load %arg4[%c1_35, %c0_36, %c0_37, %c0_38] : memref<3x16x8x1xf32, #tpu.memory_space<vmem>>, vector<1x16x8x1xf32>
    %121 = vector.shape_cast %120 : vector<1x16x8x1xf32> to vector<16x8x1xf32>
    %122 = vector.broadcast %121 : vector<16x8x1xf32> to vector<16x8x128xf32>
    %123 = arith.mulf %119, %122 : vector<16x8x128xf32>
    %cst_39 = arith.constant dense<0.000000e+00> : vector<16x128xf32>
    %124 = vector.multi_reduction <add>, %123, %cst_39 [1] : vector<16x8x128xf32> to vector<16x128xf32>
    %125 = arith.addf %124, %0 : vector<16x128xf32>
    %c1_40 = arith.constant 1 : index
    %c0_41 = arith.constant 0 : index
    %c0_42 = arith.constant 0 : index
    %126 = vector.load %arg5[%c1_40, %c0_41, %c0_42] : memref<3x16x128xf32, #tpu.memory_space<vmem>>, vector<1x16x128xf32>
    %127 = vector.shape_cast %126 : vector<1x16x128xf32> to vector<16x128xf32>
    %128 = vector.shape_cast %125 : vector<16x128xf32> to vector<1x16x128xf32>
    tpu.vector_store %arg5[%c1_40, %c0_41, %c0_42], %128 {strides = array<i32>} : memref<3x16x128xf32, #tpu.memory_space<vmem>>, vector<1x16x128xf32>,
    %129 = vector.shape_cast %124 : vector<16x128xf32> to vector<16x1x128xf32>
    %130 = vector.broadcast %129 : vector<16x1x128xf32> to vector<16x8x128xf32>
    %131 = arith.subf %130, %123 : vector<16x8x128xf32>
    %c2 = arith.constant 2 : index
    %c0_43 = arith.constant 0 : index
    %c0_44 = arith.constant 0 : index
    %c0_45 = arith.constant 0 : index
    %132 = vector.load %arg3[%c2, %c0_43, %c0_44, %c0_45] : memref<3x16x8x1xf32, #tpu.memory_space<vmem>>, vector<1x16x8x1xf32>
    %133 = vector.shape_cast %132 : vector<1x16x8x1xf32> to vector<16x8x1xf32>
    %134 = vector.broadcast %133 : vector<16x8x1xf32> to vector<16x8x128xf32>
    %135 = arith.mulf %131, %134 : vector<16x8x128xf32>
    %136 = arith.addf %135, %3 : vector<16x8x128xf32>
    %cst_46 = arith.constant 5.000000e-01 : f32
    %137 = vector.broadcast %cst_46 : f32 to vector<16x8x128xf32>
    %138 = arith.mulf %137, %136 : vector<16x8x128xf32>
    %139 = math.tanh %138 : vector<16x8x128xf32>
    %140 = math.absf %139 : vector<16x8x128xf32>
    %cst_47 = arith.constant 9.99999996E-13 : f32
    %141 = vector.broadcast %cst_47 : f32 to vector<16x8x128xf32>
    %142 = arith.maximumf %140, %141 : vector<16x8x128xf32>
    %cst_48 = arith.constant 0.000000e+00 : f32
    %143 = vector.broadcast %cst_48 : f32 to vector<16x8x128xf32>
    %144 = arith.cmpf oge, %139, %143 : vector<16x8x128xf32>
    %cst_49 = arith.constant 0.000000e+00 : f32
    %145 = vector.broadcast %cst_49 : f32 to vector<16x8x128xf32>
    %146 = arith.subf %145, %142 : vector<16x8x128xf32>
    %147 = arith.select %144, %142, %146 : vector<16x8x128xi1>, vector<16x8x128xf32>
    %cst_50 = arith.constant 1.000000e+00 : f32
    %148 = vector.broadcast %cst_50 : f32 to vector<16x8x128xf32>
    %149 = arith.select %8, %147, %148 : vector<16x8x128xi1>, vector<16x8x128xf32>
    %150 = vector.extract_strided_slice %149 {offsets = [0, 0, 0], sizes = [8, 8, 128], strides = [1, 1, 1]} : vector<16x8x128xf32> to vector<8x8x128xf32>
    %151 = vector.extract_strided_slice %149 {offsets = [8, 0, 0], sizes = [8, 8, 128], strides = [1, 1, 1]} : vector<16x8x128xf32> to vector<8x8x128xf32>
    %152 = arith.mulf %150, %151 : vector<8x8x128xf32>
    %153 = vector.extract_strided_slice %152 {offsets = [0, 0, 0], sizes = [4, 8, 128], strides = [1, 1, 1]} : vector<8x8x128xf32> to vector<4x8x128xf32>
    %154 = vector.extract_strided_slice %152 {offsets = [4, 0, 0], sizes = [4, 8, 128], strides = [1, 1, 1]} : vector<8x8x128xf32> to vector<4x8x128xf32>
    %155 = arith.mulf %153, %154 : vector<4x8x128xf32>
    %156 = vector.extract_strided_slice %155 {offsets = [0, 0, 0], sizes = [2, 8, 128], strides = [1, 1, 1]} : vector<4x8x128xf32> to vector<2x8x128xf32>
    %157 = vector.extract_strided_slice %155 {offsets = [2, 0, 0], sizes = [2, 8, 128], strides = [1, 1, 1]} : vector<4x8x128xf32> to vector<2x8x128xf32>
    %158 = arith.mulf %156, %157 : vector<2x8x128xf32>
    %159 = vector.extract_strided_slice %158 {offsets = [0, 0, 0], sizes = [1, 8, 128], strides = [1, 1, 1]} : vector<2x8x128xf32> to vector<1x8x128xf32>
    %160 = vector.extract_strided_slice %158 {offsets = [1, 0, 0], sizes = [1, 8, 128], strides = [1, 1, 1]} : vector<2x8x128xf32> to vector<1x8x128xf32>
    %161 = arith.mulf %159, %160 : vector<1x8x128xf32>
    %162 = vector.shape_cast %161 : vector<1x8x128xf32> to vector<8x128xf32>
    %163 = vector.shape_cast %162 : vector<8x128xf32> to vector<1x8x128xf32>
    %164 = vector.broadcast %163 : vector<1x8x128xf32> to vector<16x8x128xf32>
    %165 = arith.addf %149, %164 : vector<16x8x128xf32>
    %166 = vector.shape_cast %162 : vector<8x128xf32> to vector<1x8x128xf32>
    %167 = vector.broadcast %166 : vector<1x8x128xf32> to vector<16x8x128xf32>
    %168 = arith.subf %149, %167 : vector<16x8x128xf32>
    %169 = math.absf %168 : vector<16x8x128xf32>
    %cst_51 = arith.constant 9.99999996E-13 : f32
    %170 = vector.broadcast %cst_51 : f32 to vector<16x8x128xf32>
    %171 = arith.maximumf %169, %170 : vector<16x8x128xf32>
    %cst_52 = arith.constant 0.000000e+00 : f32
    %172 = vector.broadcast %cst_52 : f32 to vector<16x8x128xf32>
    %173 = arith.cmpf oge, %168, %172 : vector<16x8x128xf32>
    %cst_53 = arith.constant 0.000000e+00 : f32
    %174 = vector.broadcast %cst_53 : f32 to vector<16x8x128xf32>
    %175 = arith.subf %174, %171 : vector<16x8x128xf32>
    %176 = arith.select %173, %171, %175 : vector<16x8x128xi1>, vector<16x8x128xf32>
    %177 = tpu.reciprocal %176 {approx = true} : vector<16x8x128xf32> -> vector<16x8x128xf32>
    %178 = arith.mulf %165, %177 : vector<16x8x128xf32>
    %cst_54 = arith.constant 5.00000041E-8 : f32
    %cst_55 = arith.constant 2.000000e+07 : f32
    %179 = vector.broadcast %cst_54 : f32 to vector<16x8x128xf32>
    %180 = arith.maximumf %179, %178 : vector<16x8x128xf32>
    %181 = vector.broadcast %cst_55 : f32 to vector<16x8x128xf32>
    %182 = arith.minimumf %181, %180 : vector<16x8x128xf32>
    %183 = math.log %182 : vector<16x8x128xf32>
    %c2_56 = arith.constant 2 : index
    %c0_57 = arith.constant 0 : index
    %c0_58 = arith.constant 0 : index
    %c0_59 = arith.constant 0 : index
    %184 = vector.load %arg4[%c2_56, %c0_57, %c0_58, %c0_59] : memref<3x16x8x1xf32, #tpu.memory_space<vmem>>, vector<1x16x8x1xf32>
    %185 = vector.shape_cast %184 : vector<1x16x8x1xf32> to vector<16x8x1xf32>
    %186 = vector.broadcast %185 : vector<16x8x1xf32> to vector<16x8x128xf32>
    %187 = arith.mulf %183, %186 : vector<16x8x128xf32>
    %cst_60 = arith.constant dense<0.000000e+00> : vector<16x128xf32>
    %188 = vector.multi_reduction <add>, %187, %cst_60 [1] : vector<16x8x128xf32> to vector<16x128xf32>
    %189 = arith.addf %188, %0 : vector<16x128xf32>
    %c2_61 = arith.constant 2 : index
    %c0_62 = arith.constant 0 : index
    %c0_63 = arith.constant 0 : index
    %190 = vector.load %arg5[%c2_61, %c0_62, %c0_63] : memref<3x16x128xf32, #tpu.memory_space<vmem>>, vector<1x16x128xf32>
    %191 = vector.shape_cast %190 : vector<1x16x128xf32> to vector<16x128xf32>
    %192 = vector.shape_cast %189 : vector<16x128xf32> to vector<1x16x128xf32>
    tpu.vector_store %arg5[%c2_61, %c0_62, %c0_63], %192 {strides = array<i32>} : memref<3x16x128xf32, #tpu.memory_space<vmem>>, vector<1x16x128xf32>,
    return
  }
  func.func @transform_0(%arg0: i32) -> (i32, i32) {
    %c0_i32 = arith.constant 0 : i32
    %c0_i32_0 = arith.constant 0 : i32
    return %c0_i32, %arg0 : i32, i32
  }
  func.func @transform_1(%arg0: i32) -> (i32, i32, i32) {
    %c0_i32 = arith.constant 0 : i32
    %c0_i32_0 = arith.constant 0 : i32
    %c0_i32_1 = arith.constant 0 : i32
    %c0_i32_2 = arith.constant 0 : i32
    return %c0_i32, %c0_i32_0, %c0_i32_1 : i32, i32, i32
  }
  func.func @transform_2(%arg0: i32) -> (i32, i32, i32, i32) {
    %c0_i32 = arith.constant 0 : i32
    %c0_i32_0 = arith.constant 0 : i32
    %c0_i32_1 = arith.constant 0 : i32
    %c0_i32_2 = arith.constant 0 : i32
    %c0_i32_3 = arith.constant 0 : i32
    return %c0_i32, %c0_i32_0, %c0_i32_1, %c0_i32_2 : i32, i32, i32, i32
  }
  func.func @transform_3(%arg0: i32) -> (i32, i32, i32, i32) {
    %c0_i32 = arith.constant 0 : i32
    %c0_i32_0 = arith.constant 0 : i32
    %c0_i32_1 = arith.constant 0 : i32
    %c0_i32_2 = arith.constant 0 : i32
    %c0_i32_3 = arith.constant 0 : i32
    return %c0_i32, %c0_i32_0, %c0_i32_1, %c0_i32_2 : i32, i32, i32, i32
  }
  func.func @transform_4(%arg0: i32) -> (i32, i32, i32) {
    %c0_i32 = arith.constant 0 : i32
    %c0_i32_0 = arith.constant 0 : i32
    %c0_i32_1 = arith.constant 0 : i32
    return %c0_i32, %c0_i32_0, %arg0 : i32, i32, i32
  }
}

</mosaic_0001>

<llo_original>
// kernel: tpu_custom_call.1
$region0: #{tpu_custom_call.1}
  #allocation0 [shape = 'u32[]', space=smem, size = 0x4, offset = 0x4, fixed_abs, tag = 'smem constant byte address 0x4 - core index']
  #allocation1 [shape = 'u32[72,128]{1,0:T(1,128)}', space=vmem, size = 0x9000, scoped, tag = 'internal scratch']
  %s0 = inlined_call_operand.vmem [shape: f32[16,256], index: 0, kind: input, shape index: {}]
  %s1 = inlined_call_operand.vmem [shape: f32[16,8,1], index: 1, kind: input, shape index: {}]
  %s2 = inlined_call_operand.vmem [shape: f32[3,16,8,1], index: 2, kind: input, shape index: {}]
  %s3 = inlined_call_operand.vmem [shape: f32[3,16,8,1], index: 3, kind: input, shape index: {}]
  %s4 = inlined_call_operand.hbm [shape: f32[3,16,256], index: 4, kind: output, shape index: {}]
  %s5 = sld [smem:[#allocation0]]
  $region87: #{tpu_custom_call.1} parent=0
    _
  %s7 = ssub.s32 1, %s5
  %s8 = scalar_select 0, %s7, %s5
  $region1: #{tpu_custom_call.1} parent=0
    #allocation2 [shape = 'u8[16384]{0}', space=vmem, size = 0x4000, scoped, tag = 'input window, operand 0']
    #allocation3 [shape = 'u8[49152]{0}', space=vmem, size = 0xc000, scoped, tag = 'output window, operand 0']
    #allocation4 [shape = 's32[2]{0}', space=sflag, size = 0x8, scoped, tag = 'scoped memory for tpu_custom_call.1']
    %9 = vsyncpa [#allocation4], 0
    %s10 = scalar_lea.sflag [#allocation4], 1
    %11 = vsyncpa %s10, 0
    loop: start=0, step=1, limit=4
    $region2: #{tpu_custom_call.1} parent=1 // loop_pre_header
      _
    $region3: #{tpu_custom_call.1} parent=1 // loop_header
      %s13 = sphi 0, %s17
      %p14 = scmp.ge.s32.totalorder %s13, 4
      %s23 = sphi 0, %s25
      %s26 = sphi 0, %s23
      %s27 = sphi 0, %s26
      %s43 = sphi 0, %s27
      %s47 = sphi 0, %s47
      %s49 = sphi 0, %s47
      %s50 = sphi 0, %s49
      %s64 = sphi 0, %s50
      %s68 = sphi 0, %s68
      %s70 = sphi 0, %s68
      %s71 = sphi 0, %s70
      %s85 = sphi 0, %s71
      %s89 = sphi 0, %s89
      %s91 = sphi 0, %s89
      %s92 = sphi 0, %s91
      %s106 = sphi 0, %s92
      %s112 = sphi 0, %s114
      %s115 = sphi 0, %s112
      %s116 = sphi 0, %s115
      %s132 = sphi 0, %s116
    $region4: #{tpu_custom_call.1} parent=1 // loop_header_branch
      %16 = sbr.rel (%p14) target = $region8
    $region5: #{tpu_custom_call.1} parent=1 // loop_body
      %s18 = ssub.s32 %s13, 1
      %s19 = ssub.s32 %s13, 2
      %s20 = sadd.s32 %s13, 1
      %s21 = ssub.s32 %s13, %s20
      %p22 = scmp.eq.s32.totalorder %s21, 0
      %s24 = sadd.s32 %s23, 1
      %s25 = scalar_select %p22, %s23, %s24
      %p28 = pneg %p22
      %p29 = scmp.eq.s32.totalorder %s13, 1
      %p30 = por %p28, %p29
      %p31 = scmp.ne.s32.totalorder %s23, %s26
      %p32 = scmp.eq.s32.totalorder %s13, 0
      %p33 = por %p31, %p32
      %p34 = scmp.ne.s32.totalorder %s23, %s26
      %p35 = scmp.eq.s32.totalorder %s18, 1
      %p36 = por %p34, %p35
      %p37 = scmp.ne.s32.totalorder %s26, %s27
      %p38 = scmp.eq.s32.totalorder %s18, 0
      %p39 = por %p37, %p38
      %p40 = scmp.ne.s32.totalorder %s26, %s27
      %p41 = scmp.eq.s32.totalorder %s19, 1
      %p42 = por %p40, %p41
      %p44 = scmp.ne.s32.totalorder %s27, %s43
      %p45 = scmp.eq.s32.totalorder %s19, 0
      %p46 = por %p44, %p45
      %s48 = sadd.s32 %s47, 1
      %p51 = scmp.eq.s32.totalorder %s13, 1
      %p52 = scmp.ne.s32.totalorder %s47, %s49
      %p53 = scmp.eq.s32.totalorder %s13, 0
      %p54 = por %p52, %p53
      %p55 = scmp.ne.s32.totalorder %s47, %s49
      %p56 = scmp.eq.s32.totalorder %s18, 1
      %p57 = por %p55, %p56
      %p58 = scmp.ne.s32.totalorder %s49, %s50
      %p59 = scmp.eq.s32.totalorder %s18, 0
      %p60 = por %p58, %p59
      %p61 = scmp.ne.s32.totalorder %s49, %s50
      %p62 = scmp.eq.s32.totalorder %s19, 1
      %p63 = por %p61, %p62
      %p65 = scmp.ne.s32.totalorder %s50, %s64
      %p66 = scmp.eq.s32.totalorder %s19, 0
      %p67 = por %p65, %p66
      %s69 = sadd.s32 %s68, 1
      %p72 = scmp.eq.s32.totalorder %s13, 1
      %p73 = scmp.ne.s32.totalorder %s68, %s70
      %p74 = scmp.eq.s32.totalorder %s13, 0
      %p75 = por %p73, %p74
      %p76 = scmp.ne.s32.totalorder %s68, %s70
      %p77 = scmp.eq.s32.totalorder %s18, 1
      %p78 = por %p76, %p77
      %p79 = scmp.ne.s32.totalorder %s70, %s71
      %p80 = scmp.eq.s32.totalorder %s18, 0
      %p81 = por %p79, %p80
      %p82 = scmp.ne.s32.totalorder %s70, %s71
      %p83 = scmp.eq.s32.totalorder %s19, 1
      %p84 = por %p82, %p83
      %p86 = scmp.ne.s32.totalorder %s71, %s85
      %p87 = scmp.eq.s32.totalorder %s19, 0
      %p88 = por %p86, %p87
      %s90 = sadd.s32 %s89, 1
      %p93 = scmp.eq.s32.totalorder %s13, 1
      %p94 = scmp.ne.s32.totalorder %s89, %s91
      %p95 = scmp.eq.s32.totalorder %s13, 0
      %p96 = por %p94, %p95
      %p97 = scmp.ne.s32.totalorder %s89, %s91
      %p98 = scmp.eq.s32.totalorder %s18, 1
      %p99 = por %p97, %p98
      %p100 = scmp.ne.s32.totalorder %s91, %s92
      %p101 = scmp.eq.s32.totalorder %s18, 0
      %p102 = por %p100, %p101
      %p103 = scmp.ne.s32.totalorder %s91, %s92
      %p104 = scmp.eq.s32.totalorder %s19, 1
      %p105 = por %p103, %p104
      %p107 = scmp.ne.s32.totalorder %s92, %s106
      %p108 = scmp.eq.s32.totalorder %s19, 0
      %p109 = por %p107, %p108
      %s110 = ssub.s32 %s13, %s20
      %p111 = scmp.eq.s32.totalorder %s110, 0
      %s113 = sadd.s32 %s112, 1
      %s114 = scalar_select %p111, %s112, %s113
      %p117 = pneg %p111
      %p118 = scmp.eq.s32.totalorder %s13, 1
      %p119 = por %p117, %p118
      %p120 = scmp.ne.s32.totalorder %s112, %s115
      %p121 = scmp.eq.s32.totalorder %s13, 0
      %p122 = por %p120, %p121
      %p123 = scmp.ne.s32.totalorder %s112, %s115
      %p124 = scmp.eq.s32.totalorder %s18, 1
      %p125 = por %p123, %p124
      %p126 = scmp.ne.s32.totalorder %s115, %s116
      %p127 = scmp.eq.s32.totalorder %s18, 0
      %p128 = por %p126, %p127
      %p129 = scmp.ne.s32.totalorder %s115, %s116
      %p130 = scmp.eq.s32.totalorder %s19, 1
      %p131 = por %p129, %p130
      %p133 = scmp.ne.s32.totalorder %s116, %s132
      %p134 = scmp.eq.s32.totalorder %s19, 0
      %p135 = por %p133, %p134
      %p136 = scmp.le.s32.totalorder 1, %s13
      %p137 = scmp.lt.s32.totalorder %s13, 3
      %p138 = pnand %p136, %p137
      %p139 = pneg %p138
      // Predicated region
      $region9: #{tpu_custom_call.1} parent=5 // pred_check
        _
      $region10: #{tpu_custom_call.1} parent=5 // pred_check_branch
        %141 = sbr.rel (%p138) target = $region12
      $region11: #{tpu_custom_call.1} parent=5 // pred_region
        %s142 = ssub.s32 %s13, 1
        // Predicated region
        $region13: #{tpu_custom_call.1} parent=11 // pred_check
          %p143 = pneg %p60
        $region14: #{tpu_custom_call.1} parent=11 // pred_check_branch
          %145 = sbr.rel (%p143) target = $region16
        $region15: #{tpu_custom_call.1} parent=11 // pred_region
          _
        $region16: #{tpu_custom_call.1} parent=11 // pred_fallthru
          _
        // Predicated region
        $region17: #{tpu_custom_call.1} parent=11 // pred_check
          %p146 = pneg %p81
        $region18: #{tpu_custom_call.1} parent=11 // pred_check_branch
          %148 = sbr.rel (%p146) target = $region20
        $region19: #{tpu_custom_call.1} parent=11 // pred_region
          _
        $region20: #{tpu_custom_call.1} parent=11 // pred_fallthru
          _
        // Predicated region
        $region21: #{tpu_custom_call.1} parent=11 // pred_check
          %p149 = pneg %p102
        $region22: #{tpu_custom_call.1} parent=11 // pred_check_branch
          %151 = sbr.rel (%p149) target = $region24
        $region23: #{tpu_custom_call.1} parent=11 // pred_region
          _
        $region24: #{tpu_custom_call.1} parent=11 // pred_fallthru
          _
      $region12: #{tpu_custom_call.1} parent=5 // pred_fallthru
        _
      %p152 = scmp.lt.s32.totalorder %s13, 2
      // Predicated region
      $region25: #{tpu_custom_call.1} parent=5 // pred_check
        %p153 = pneg %p152
      $region26: #{tpu_custom_call.1} parent=5 // pred_check_branch
        %155 = sbr.rel (%p153) target = $region28
      $region27: #{tpu_custom_call.1} parent=5 // pred_region
        // Predicated region
        $region29: #{tpu_custom_call.1} parent=27 // pred_check
          %p156 = pneg %p33
        $region30: #{tpu_custom_call.1} parent=27 // pred_check_branch
          %158 = sbr.rel (%p156) target = $region32
        $region31: #{tpu_custom_call.1} parent=27 // pred_region
          %s159 = sand.u32 %s23, 1
          %s160 = sand.u32 %s23, 1
          %s161 = smul.addr %s160, 16
          %s162 = scalar_lea.vmem [#allocation2], %s161
          %s163 = smul.addr %s13, 8
          %s164 = scalar_lea.vmem %s0, %s163
          // Predicated region
          $region33: #{tpu_custom_call.1} parent=31 // pred_check
            _
          $region34: #{tpu_custom_call.1} parent=31 // pred_check_branch
            %166 = sbr.rel (0) target = $region36
          $region35: #{tpu_custom_call.1} parent=31 // pred_region
            // Predicated region
            $region37: #{tpu_custom_call.1} parent=35 // pred_check
              _
            $region38: #{tpu_custom_call.1} parent=35 // pred_check_branch
              %168 = sbr.rel (0) target = $region40
            $region39: #{tpu_custom_call.1} parent=35 // pred_region
              // Predicated region
              $region52: #{tpu_custom_call.1} parent=39 // pred_check
                _
              $region53: #{tpu_custom_call.1} parent=39 // pred_check_branch
                %186 = sbr.rel (0) target = $region55
              $region54: #{tpu_custom_call.1} parent=39 // pred_region
                loop: start=0, step=1, limit=1
                $region56: #{tpu_custom_call.1} parent=54 // loop_pre_header
                  _
                $region57: #{tpu_custom_call.1} parent=54 // loop_header
                  %s188 = sphi 0, %s192
                  %p189 = scmp.ge.s32.totalorder %s188, 1
                  %s193 = sphi %s164, %s164
                  %s194 = sphi %s162, %s162
                $region58: #{tpu_custom_call.1} parent=54 // loop_header_branch
                  %191 = sbr.rel (%p189) target = $region62
                $region59: #{tpu_custom_call.1} parent=54 // loop_body
                  %v195 = vld [vmem:[%s193] sm:$0xff]
                  %196 = vst [vmem:[%s194] sm:$0xff] %v195
                  %v197 = vld [vmem:[%s193 + $0x10] sm:$0xff]
                  %198 = vst [vmem:[%s194 + $0x8] sm:$0xff] %v197
                $region60: #{tpu_custom_call.1} parent=54 // loop_footer
                  %s192 = sadd.s32 1, %s188
                $region61: #{tpu_custom_call.1} parent=54 // loop_footer_branch
                  %187 = sbr.rel target = $region57
                $region62: #{tpu_custom_call.1} parent=54 // loop_exit
                  _
              $region55: #{tpu_custom_call.1} parent=39 // pred_fallthru
                _
              // Predicated region
              $region63: #{tpu_custom_call.1} parent=39 // pred_check
                _
              $region64: #{tpu_custom_call.1} parent=39 // pred_check_branch
                %200 = sbr.rel target = $region66
              $region65: #{tpu_custom_call.1} parent=39 // pred_region
                _
              $region66: #{tpu_custom_call.1} parent=39 // pred_fallthru
                _
            $region40: #{tpu_custom_call.1} parent=35 // pred_fallthru
              _
            // Predicated region
            $region41: #{tpu_custom_call.1} parent=35 // pred_check
              _
            $region42: #{tpu_custom_call.1} parent=35 // pred_check_branch
              %170 = sbr.rel target = $region44
            $region43: #{tpu_custom_call.1} parent=35 // pred_region
              %s172 = ssub.s32 256, 1
              loop: start=0, step=1, limit=1
              $region45: #{tpu_custom_call.1} parent=43 // loop_pre_header
                _
              $region46: #{tpu_custom_call.1} parent=43 // loop_header
                %s174 = sphi 0, %s178
                %p175 = scmp.ge.s32.totalorder %s174, 1
                %s179 = sphi %s164, %s164
                %s180 = sphi %s162, %s162
              $region47: #{tpu_custom_call.1} parent=43 // loop_header_branch
                %177 = sbr.rel (%p175) target = $region51
              $region48: #{tpu_custom_call.1} parent=43 // loop_body
                %v181 = vld [vmem:[%s179] sm:%s172]
                %182 = vst [vmem:[%s180] sm:%s172] %v181
                %v183 = vld [vmem:[%s179 + $0x10] sm:%s172]
                %184 = vst [vmem:[%s180 + $0x8] sm:%s172] %v183
              $region49: #{tpu_custom_call.1} parent=43 // loop_footer
                %s178 = sadd.s32 1, %s174
              $region50: #{tpu_custom_call.1} parent=43 // loop_footer_branch
                %173 = sbr.rel target = $region46
              $region51: #{tpu_custom_call.1} parent=43 // loop_exit
                _
            $region44: #{tpu_custom_call.1} parent=35 // pred_fallthru
              _
          $region36: #{tpu_custom_call.1} parent=31 // pred_fallthru
            _
          %201 = vnop
        $region32: #{tpu_custom_call.1} parent=27 // pred_fallthru
          _
      $region28: #{tpu_custom_call.1} parent=5 // pred_fallthru
        _
      %p202 = scmp.le.s32.totalorder 1, %s13
      %p203 = scmp.lt.s32.totalorder %s13, 3
      %p204 = pnand %p202, %p203
      %p205 = pneg %p204
      // Predicated region
      $region67: #{tpu_custom_call.1} parent=5 // pred_check
        _
      $region68: #{tpu_custom_call.1} parent=5 // pred_check_branch
        %207 = sbr.rel (%p204) target = $region70
      $region69: #{tpu_custom_call.1} parent=5 // pred_region
        %s208 = ssub.s32 %s13, 1
        %s209 = sand.u32 %s26, 1
        %s210 = sand.u32 %s26, 1
        %s211 = smul.addr %s210, 16
        %s212 = scalar_lea.vmem [#allocation2], %s211
        // Predicated region
        $region71: #{tpu_custom_call.1} parent=69 // pred_check
          %p213 = pneg %p39
        $region72: #{tpu_custom_call.1} parent=69 // pred_check_branch
          %215 = sbr.rel (%p213) target = $region74
        $region73: #{tpu_custom_call.1} parent=69 // pred_region
          _
        $region74: #{tpu_custom_call.1} parent=69 // pred_fallthru
          _
        %s216 = sand.u32 %s26, 1
        %s217 = sand.u32 %s26, 1
        %s218 = smul.addr %s217, 16
        %s219 = scalar_lea.vmem [#allocation2], %s218
        %p220 = pneg %p39
        %p221 = pneg %p36
        %p222 = pneg %p60
        %p223 = pneg %p57
        %p224 = pneg %p81
        %p225 = pneg %p78
        %p226 = pneg %p102
        %p227 = pneg %p99
        %p228 = pneg %p128
        %p229 = pneg %p125
        %s230 = sand.u32 %s115, 1
        %s231 = scalar_lea.sflag [#allocation4], %s230
        %s232 = sand.u32 %s115, 1
        %s233 = smul.addr %s232, 48
        %s234 = scalar_lea.vmem [#allocation3], %s233
        %v235 = vld [vmem:[%s212] sm:$0xff]
        %v236 = vld [vmem:[%s212 + $0x8] sm:$0xff]
        %v239 = vrot.slane %v235, 1
        %v240 = vrot.slane %v235, 2
        %v241 = vrot.slane %v235, 3
        %v242 = vrot.slane %v235, 4
        %v243 = vrot.slane %v235, 5
        %v244 = vrot.slane %v235, 6
        %v245 = vrot.slane %v235, 7
        %v246 = vrot.slane %v236, 1
        %v247 = vrot.slane %v236, 2
        %v248 = vrot.slane %v236, 3
        %v249 = vrot.slane %v236, 4
        %v250 = vrot.slane %v236, 5
        %v251 = vrot.slane %v236, 6
        %v252 = vrot.slane %v236, 7
        %v253 = vperm.slane %v235, 0
        %v254 = vperm.slane %v239, 0
        %v255 = vperm.slane %v240, 0
        %v256 = vperm.slane %v241, 0
        %v257 = vperm.slane %v242, 0
        %v258 = vperm.slane %v243, 0
        %v259 = vperm.slane %v244, 0
        %v260 = vperm.slane %v245, 0
        %v261 = vperm.slane %v236, 0
        %v262 = vperm.slane %v246, 0
        %v263 = vperm.slane %v247, 0
        %v264 = vperm.slane %v248, 0
        %v265 = vperm.slane %v249, 0
        %v266 = vperm.slane %v250, 0
        %v267 = vperm.slane %v251, 0
        %v268 = vperm.slane %v252, 0
        %v285 = vld [vmem:[%s1] sm:$0xff]
        %v286 = vld [vmem:[%s1 + $0x8] sm:$0xff]
        %v287 = vld [vmem:[%s1 + $0x10] sm:$0xff]
        %v288 = vld [vmem:[%s1 + $0x18] sm:$0xff]
        %v289 = vld [vmem:[%s1 + $0x20] sm:$0xff]
        %v290 = vld [vmem:[%s1 + $0x28] sm:$0xff]
        %v291 = vld [vmem:[%s1 + $0x30] sm:$0xff]
        %v292 = vld [vmem:[%s1 + $0x38] sm:$0xff]
        %v293 = vld [vmem:[%s1 + $0x40] sm:$0xff]
        %v294 = vld [vmem:[%s1 + $0x48] sm:$0xff]
        %v295 = vld [vmem:[%s1 + $0x50] sm:$0xff]
        %v296 = vld [vmem:[%s1 + $0x58] sm:$0xff]
        %v297 = vld [vmem:[%s1 + $0x60] sm:$0xff]
        %v298 = vld [vmem:[%s1 + $0x68] sm:$0xff]
        %v299 = vld [vmem:[%s1 + $0x70] sm:$0xff]
        %v300 = vld [vmem:[%s1 + $0x78] sm:$0xff]
        %302 = vset.pattern.permute.xlu0 0
        %303 = vperm.xlu0 %302, %v285
        %v304 = vpop.permute.xlu0 %303
        %307 = vset.pattern.permute.xlu0 0
        %308 = vperm.xlu0 %307, %v286
        %v309 = vpop.permute.xlu0 %308
        %312 = vset.pattern.permute.xlu0 0
        %313 = vperm.xlu0 %312, %v287
        %v314 = vpop.permute.xlu0 %313
        %317 = vset.pattern.permute.xlu0 0
        %318 = vperm.xlu0 %317, %v288
        %v319 = vpop.permute.xlu0 %318
        %322 = vset.pattern.permute.xlu0 0
        %323 = vperm.xlu0 %322, %v289
        %v324 = vpop.permute.xlu0 %323
        %327 = vset.pattern.permute.xlu0 0
        %328 = vperm.xlu0 %327, %v290
        %v329 = vpop.permute.xlu0 %328
        %332 = vset.pattern.permute.xlu0 0
        %333 = vperm.xlu0 %332, %v291
        %v334 = vpop.permute.xlu0 %333
        %337 = vset.pattern.permute.xlu0 0
        %338 = vperm.xlu0 %337, %v292
        %v339 = vpop.permute.xlu0 %338
        %342 = vset.pattern.permute.xlu0 0
        %343 = vperm.xlu0 %342, %v293
        %v344 = vpop.permute.xlu0 %343
        %347 = vset.pattern.permute.xlu0 0
        %348 = vperm.xlu0 %347, %v294
        %v349 = vpop.permute.xlu0 %348
        %352 = vset.pattern.permute.xlu0 0
        %353 = vperm.xlu0 %352, %v295
        %v354 = vpop.permute.xlu0 %353
        %357 = vset.pattern.permute.xlu0 0
        %358 = vperm.xlu0 %357, %v296
        %v359 = vpop.permute.xlu0 %358
        %362 = vset.pattern.permute.xlu0 0
        %363 = vperm.xlu0 %362, %v297
        %v364 = vpop.permute.xlu0 %363
        %367 = vset.pattern.permute.xlu0 0
        %368 = vperm.xlu0 %367, %v298
        %v369 = vpop.permute.xlu0 %368
        %372 = vset.pattern.permute.xlu0 0
        %373 = vperm.xlu0 %372, %v299
        %v374 = vpop.permute.xlu0 %373
        %377 = vset.pattern.permute.xlu0 0
        %378 = vperm.xlu0 %377, %v300
        %v379 = vpop.permute.xlu0 %378
        %vm381 = vcmp.gt.f32.partialorder %v304, 0.0
        %vm382 = vcmp.gt.f32.partialorder %v309, 0.0
        %vm383 = vcmp.gt.f32.partialorder %v314, 0.0
        %vm384 = vcmp.gt.f32.partialorder %v319, 0.0
        %vm385 = vcmp.gt.f32.partialorder %v324, 0.0
        %vm386 = vcmp.gt.f32.partialorder %v329, 0.0
        %vm387 = vcmp.gt.f32.partialorder %v334, 0.0
        %vm388 = vcmp.gt.f32.partialorder %v339, 0.0
        %vm389 = vcmp.gt.f32.partialorder %v344, 0.0
        %vm390 = vcmp.gt.f32.partialorder %v349, 0.0
        %vm391 = vcmp.gt.f32.partialorder %v354, 0.0
        %vm392 = vcmp.gt.f32.partialorder %v359, 0.0
        %vm393 = vcmp.gt.f32.partialorder %v364, 0.0
        %vm394 = vcmp.gt.f32.partialorder %v369, 0.0
        %vm395 = vcmp.gt.f32.partialorder %v374, 0.0
        %vm396 = vcmp.gt.f32.partialorder %v379, 0.0
        %v397 = vmul.f32 %v253, 0.5
        %v398 = vmul.f32 %v254, 0.5
        %v399 = vmul.f32 %v255, 0.5
        %v400 = vmul.f32 %v256, 0.5
        %v401 = vmul.f32 %v257, 0.5
        %v402 = vmul.f32 %v258, 0.5
        %v403 = vmul.f32 %v259, 0.5
        %v404 = vmul.f32 %v260, 0.5
        %v405 = vmul.f32 %v261, 0.5
        %v406 = vmul.f32 %v262, 0.5
        %v407 = vmul.f32 %v263, 0.5
        %v408 = vmul.f32 %v264, 0.5
        %v409 = vmul.f32 %v265, 0.5
        %v410 = vmul.f32 %v266, 0.5
        %v411 = vmul.f32 %v267, 0.5
        %v412 = vmul.f32 %v268, 0.5
        %v413 = vtanh.pop %v397
        %v414 = vtanh.pop %v398
        %v415 = vtanh.pop %v399
        %v416 = vtanh.pop %v400
        %v417 = vtanh.pop %v401
        %v418 = vtanh.pop %v402
        %v419 = vtanh.pop %v403
        %v420 = vtanh.pop %v404
        %v421 = vtanh.pop %v405
        %v422 = vtanh.pop %v406
        %v423 = vtanh.pop %v407
        %v424 = vtanh.pop %v408
        %v425 = vtanh.pop %v409
        %v426 = vtanh.pop %v410
        %v427 = vtanh.pop %v411
        %v428 = vtanh.pop %v412
        %v429 = vand.u32 2147483647, %v413
        %v430 = vand.u32 2147483647, %v414
        %v431 = vand.u32 2147483647, %v415
        %v432 = vand.u32 2147483647, %v416
        %v433 = vand.u32 2147483647, %v417
        %v434 = vand.u32 2147483647, %v418
        %v435 = vand.u32 2147483647, %v419
        %v436 = vand.u32 2147483647, %v420
        %v437 = vand.u32 2147483647, %v421
        %v438 = vand.u32 2147483647, %v422
        %v439 = vand.u32 2147483647, %v423
        %v440 = vand.u32 2147483647, %v424
        %v441 = vand.u32 2147483647, %v425
        %v442 = vand.u32 2147483647, %v426
        %v443 = vand.u32 2147483647, %v427
        %v444 = vand.u32 2147483647, %v428
        %v445 = vmax.f32 %v429, 1e-12
        %v446 = vmax.f32 %v430, 1e-12
        %v447 = vmax.f32 %v431, 1e-12
        %v448 = vmax.f32 %v432, 1e-12
        %v449 = vmax.f32 %v433, 1e-12
        %v450 = vmax.f32 %v434, 1e-12
        %v451 = vmax.f32 %v435, 1e-12
        %v452 = vmax.f32 %v436, 1e-12
        %v453 = vmax.f32 %v437, 1e-12
        %v454 = vmax.f32 %v438, 1e-12
        %v455 = vmax.f32 %v439, 1e-12
        %v456 = vmax.f32 %v440, 1e-12
        %v457 = vmax.f32 %v441, 1e-12
        %v458 = vmax.f32 %v442, 1e-12
        %v459 = vmax.f32 %v443, 1e-12
        %v460 = vmax.f32 %v444, 1e-12
        %vm461 = vcmp.ge.f32.partialorder %v413, 0.0
        %vm462 = vcmp.ge.f32.partialorder %v414, 0.0
        %vm463 = vcmp.ge.f32.partialorder %v415, 0.0
        %vm464 = vcmp.ge.f32.partialorder %v416, 0.0
        %vm465 = vcmp.ge.f32.partialorder %v417, 0.0
        %vm466 = vcmp.ge.f32.partialorder %v418, 0.0
        %vm467 = vcmp.ge.f32.partialorder %v419, 0.0
        %vm468 = vcmp.ge.f32.partialorder %v420, 0.0
        %vm469 = vcmp.ge.f32.partialorder %v421, 0.0
        %vm470 = vcmp.ge.f32.partialorder %v422, 0.0
        %vm471 = vcmp.ge.f32.partialorder %v423, 0.0
        %vm472 = vcmp.ge.f32.partialorder %v424, 0.0
        %vm473 = vcmp.ge.f32.partialorder %v425, 0.0
        %vm474 = vcmp.ge.f32.partialorder %v426, 0.0
        %vm475 = vcmp.ge.f32.partialorder %v427, 0.0
        %vm476 = vcmp.ge.f32.partialorder %v428, 0.0
        %v477 = vsub.f32 0.0, %v445
        %v478 = vsub.f32 0.0, %v446
        %v479 = vsub.f32 0.0, %v447
        %v480 = vsub.f32 0.0, %v448
        %v481 = vsub.f32 0.0, %v449
        %v482 = vsub.f32 0.0, %v450
        %v483 = vsub.f32 0.0, %v451
        %v484 = vsub.f32 0.0, %v452
        %v485 = vsub.f32 0.0, %v453
        %v486 = vsub.f32 0.0, %v454
        %v487 = vsub.f32 0.0, %v455
        %v488 = vsub.f32 0.0, %v456
        %v489 = vsub.f32 0.0, %v457
        %v490 = vsub.f32 0.0, %v458
        %v491 = vsub.f32 0.0, %v459
        %v492 = vsub.f32 0.0, %v460
        %v493 = vsel %vm461, %v445, %v477
        %v494 = vsel %vm462, %v446, %v478
        %v495 = vsel %vm463, %v447, %v479
        %v496 = vsel %vm464, %v448, %v480
        %v497 = vsel %vm465, %v449, %v481
        %v498 = vsel %vm466, %v450, %v482
        %v499 = vsel %vm467, %v451, %v483
        %v500 = vsel %vm468, %v452, %v484
        %v501 = vsel %vm469, %v453, %v485
        %v502 = vsel %vm470, %v454, %v486
        %v503 = vsel %vm471, %v455, %v487
        %v504 = vsel %vm472, %v456, %v488
        %v505 = vsel %vm473, %v457, %v489
        %v506 = vsel %vm474, %v458, %v490
        %v507 = vsel %vm475, %v459, %v491
        %v508 = vsel %vm476, %v460, %v492
        %v509 = vsel %vm381, %v493, 1.0
        %v510 = vsel %vm382, %v494, 1.0
        %v511 = vsel %vm383, %v495, 1.0
        %v512 = vsel %vm384, %v496, 1.0
        %v513 = vsel %vm385, %v497, 1.0
        %v514 = vsel %vm386, %v498, 1.0
        %v515 = vsel %vm387, %v499, 1.0
        %v516 = vsel %vm388, %v500, 1.0
        %v517 = vsel %vm389, %v501, 1.0
        %v518 = vsel %vm390, %v502, 1.0
        %v519 = vsel %vm391, %v503, 1.0
        %v520 = vsel %vm392, %v504, 1.0
        %v521 = vsel %vm393, %v505, 1.0
        %v522 = vsel %vm394, %v506, 1.0
        %v523 = vsel %vm395, %v507, 1.0
        %v524 = vsel %vm396, %v508, 1.0
        %v525 = vmul.f32 %v509, %v517
        %v526 = vmul.f32 %v510, %v518
        %v527 = vmul.f32 %v511, %v519
        %v528 = vmul.f32 %v512, %v520
        %v529 = vmul.f32 %v513, %v521
        %v530 = vmul.f32 %v514, %v522
        %v531 = vmul.f32 %v515, %v523
        %v532 = vmul.f32 %v516, %v524
        %v533 = vmul.f32 %v525, %v529
        %v534 = vmul.f32 %v526, %v530
        %v535 = vmul.f32 %v527, %v531
        %v536 = vmul.f32 %v528, %v532
        %v537 = vmul.f32 %v533, %v535
        %v538 = vmul.f32 %v534, %v536
        %v539 = vmul.f32 %v537, %v538
        %v540 = vadd.f32 %v509, %v539
        %v541 = vadd.f32 %v510, %v539
        %v542 = vadd.f32 %v511, %v539
        %v543 = vadd.f32 %v512, %v539
        %v544 = vadd.f32 %v513, %v539
        %v545 = vadd.f32 %v514, %v539
        %v546 = vadd.f32 %v515, %v539
        %v547 = vadd.f32 %v516, %v539
        %v548 = vadd.f32 %v517, %v539
        %v549 = vadd.f32 %v518, %v539
        %v550 = vadd.f32 %v519, %v539
        %v551 = vadd.f32 %v520, %v539
        %v552 = vadd.f32 %v521, %v539
        %v553 = vadd.f32 %v522, %v539
        %v554 = vadd.f32 %v523, %v539
        %v555 = vadd.f32 %v524, %v539
        %v556 = vsub.f32 %v509, %v539
        %v557 = vsub.f32 %v510, %v539
        %v558 = vsub.f32 %v511, %v539
        %v559 = vsub.f32 %v512, %v539
        %v560 = vsub.f32 %v513, %v539
        %v561 = vsub.f32 %v514, %v539
        %v562 = vsub.f32 %v515, %v539
        %v563 = vsub.f32 %v516, %v539
        %v564 = vsub.f32 %v517, %v539
        %v565 = vsub.f32 %v518, %v539
        %v566 = vsub.f32 %v519, %v539
        %v567 = vsub.f32 %v520, %v539
        %v568 = vsub.f32 %v521, %v539
        %v569 = vsub.f32 %v522, %v539
        %v570 = vsub.f32 %v523, %v539
        %v571 = vsub.f32 %v524, %v539
        %v572 = vand.u32 2147483647, %v556
        %v573 = vand.u32 2147483647, %v557
        %v574 = vand.u32 2147483647, %v558
        %v575 = vand.u32 2147483647, %v559
        %v576 = vand.u32 2147483647, %v560
        %v577 = vand.u32 2147483647, %v561
        %v578 = vand.u32 2147483647, %v562
        %v579 = vand.u32 2147483647, %v563
        %v580 = vand.u32 2147483647, %v564
        %v581 = vand.u32 2147483647, %v565
        %v582 = vand.u32 2147483647, %v566
        %v583 = vand.u32 2147483647, %v567
        %v584 = vand.u32 2147483647, %v568
        %v585 = vand.u32 2147483647, %v569
        %v586 = vand.u32 2147483647, %v570
        %v587 = vand.u32 2147483647, %v571
        %v588 = vmax.f32 %v572, 1e-12
        %v589 = vmax.f32 %v573, 1e-12
        %v590 = vmax.f32 %v574, 1e-12
        %v591 = vmax.f32 %v575, 1e-12
        %v592 = vmax.f32 %v576, 1e-12
        %v593 = vmax.f32 %v577, 1e-12
        %v594 = vmax.f32 %v578, 1e-12
        %v595 = vmax.f32 %v579, 1e-12
        %v596 = vmax.f32 %v580, 1e-12
        %v597 = vmax.f32 %v581, 1e-12
        %v598 = vmax.f32 %v582, 1e-12
        %v599 = vmax.f32 %v583, 1e-12
        %v600 = vmax.f32 %v584, 1e-12
        %v601 = vmax.f32 %v585, 1e-12
        %v602 = vmax.f32 %v586, 1e-12
        %v603 = vmax.f32 %v587, 1e-12
        %vm604 = vcmp.ge.f32.partialorder %v556, 0.0
        %vm605 = vcmp.ge.f32.partialorder %v557, 0.0
        %vm606 = vcmp.ge.f32.partialorder %v558, 0.0
        %vm607 = vcmp.ge.f32.partialorder %v559, 0.0
        %vm608 = vcmp.ge.f32.partialorder %v560, 0.0
        %vm609 = vcmp.ge.f32.partialorder %v561, 0.0
        %vm610 = vcmp.ge.f32.partialorder %v562, 0.0
        %vm611 = vcmp.ge.f32.partialorder %v563, 0.0
        %vm612 = vcmp.ge.f32.partialorder %v564, 0.0
        %vm613 = vcmp.ge.f32.partialorder %v565, 0.0
        %vm614 = vcmp.ge.f32.partialorder %v566, 0.0
        %vm615 = vcmp.ge.f32.partialorder %v567, 0.0
        %vm616 = vcmp.ge.f32.partialorder %v568, 0.0
        %vm617 = vcmp.ge.f32.partialorder %v569, 0.0
        %vm618 = vcmp.ge.f32.partialorder %v570, 0.0
        %vm619 = vcmp.ge.f32.partialorder %v571, 0.0
        %v620 = vsub.f32 0.0, %v588
        %v621 = vsub.f32 0.0, %v589
        %v622 = vsub.f32 0.0, %v590
        %v623 = vsub.f32 0.0, %v591
        %v624 = vsub.f32 0.0, %v592
        %v625 = vsub.f32 0.0, %v593
        %v626 = vsub.f32 0.0, %v594
        %v627 = vsub.f32 0.0, %v595
        %v628 = vsub.f32 0.0, %v596
        %v629 = vsub.f32 0.0, %v597
        %v630 = vsub.f32 0.0, %v598
        %v631 = vsub.f32 0.0, %v599
        %v632 = vsub.f32 0.0, %v600
        %v633 = vsub.f32 0.0, %v601
        %v634 = vsub.f32 0.0, %v602
        %v635 = vsub.f32 0.0, %v603
        %v636 = vsel %vm604, %v588, %v620
        %v637 = vsel %vm605, %v589, %v621
        %v638 = vsel %vm606, %v590, %v622
        %v639 = vsel %vm607, %v591, %v623
        %v640 = vsel %vm608, %v592, %v624
        %v641 = vsel %vm609, %v593, %v625
        %v642 = vsel %vm610, %v594, %v626
        %v643 = vsel %vm611, %v595, %v627
        %v644 = vsel %vm612, %v596, %v628
        %v645 = vsel %vm613, %v597, %v629
        %v646 = vsel %vm614, %v598, %v630
        %v647 = vsel %vm615, %v599, %v631
        %v648 = vsel %vm616, %v600, %v632
        %v649 = vsel %vm617, %v601, %v633
        %v650 = vsel %vm618, %v602, %v634
        %v651 = vsel %vm619, %v603, %v635
        %v652 = vrcp.pop %v636
        %v653 = vrcp.pop %v637
        %v654 = vrcp.pop %v638
        %v655 = vrcp.pop %v639
        %v656 = vrcp.pop %v640
        %v657 = vrcp.pop %v641
        %v658 = vrcp.pop %v642
        %v659 = vrcp.pop %v643
        %v660 = vrcp.pop %v644
        %v661 = vrcp.pop %v645
        %v662 = vrcp.pop %v646
        %v663 = vrcp.pop %v647
        %v664 = vrcp.pop %v648
        %v665 = vrcp.pop %v649
        %v666 = vrcp.pop %v650
        %v667 = vrcp.pop %v651
        %v668 = vmul.f32 %v540, %v652
        %v669 = vmul.f32 %v541, %v653
        %v670 = vmul.f32 %v542, %v654
        %v671 = vmul.f32 %v543, %v655
        %v672 = vmul.f32 %v544, %v656
        %v673 = vmul.f32 %v545, %v657
        %v674 = vmul.f32 %v546, %v658
        %v675 = vmul.f32 %v547, %v659
        %v676 = vmul.f32 %v548, %v660
        %v677 = vmul.f32 %v549, %v661
        %v678 = vmul.f32 %v550, %v662
        %v679 = vmul.f32 %v551, %v663
        %v680 = vmul.f32 %v552, %v664
        %v681 = vmul.f32 %v553, %v665
        %v682 = vmul.f32 %v554, %v666
        %v683 = vmul.f32 %v555, %v667
        %v684 = vmax.f32 %v668, 5.0000004e-08
        %v685 = vmax.f32 %v669, 5.0000004e-08
        %v686 = vmax.f32 %v670, 5.0000004e-08
        %v687 = vmax.f32 %v671, 5.0000004e-08
        %v688 = vmax.f32 %v672, 5.0000004e-08
        %v689 = vmax.f32 %v673, 5.0000004e-08
        %v690 = vmax.f32 %v674, 5.0000004e-08
        %v691 = vmax.f32 %v675, 5.0000004e-08
        %v692 = vmax.f32 %v676, 5.0000004e-08
        %v693 = vmax.f32 %v677, 5.0000004e-08
        %v694 = vmax.f32 %v678, 5.0000004e-08
        %v695 = vmax.f32 %v679, 5.0000004e-08
        %v696 = vmax.f32 %v680, 5.0000004e-08
        %v697 = vmax.f32 %v681, 5.0000004e-08
        %v698 = vmax.f32 %v682, 5.0000004e-08
        %v699 = vmax.f32 %v683, 5.0000004e-08
        %v700 = vmin.f32 %v684, 20000000.0
        %v701 = vmin.f32 %v685, 20000000.0
        %v702 = vmin.f32 %v686, 20000000.0
        %v703 = vmin.f32 %v687, 20000000.0
        %v704 = vmin.f32 %v688, 20000000.0
        %v705 = vmin.f32 %v689, 20000000.0
        %v706 = vmin.f32 %v690, 20000000.0
        %v707 = vmin.f32 %v691, 20000000.0
        %v708 = vmin.f32 %v692, 20000000.0
        %v709 = vmin.f32 %v693, 20000000.0
        %v710 = vmin.f32 %v694, 20000000.0
        %v711 = vmin.f32 %v695, 20000000.0
        %v712 = vmin.f32 %v696, 20000000.0
        %v713 = vmin.f32 %v697, 20000000.0
        %v714 = vmin.f32 %v698, 20000000.0
        %v715 = vmin.f32 %v699, 20000000.0
        %v716 = vlog2.pop %v700
        %v717 = vmul.f32 %v716, 0.6931472
        %v718 = vlog2.pop %v701
        %v719 = vmul.f32 %v718, 0.6931472
        %v720 = vlog2.pop %v702
        %v721 = vmul.f32 %v720, 0.6931472
        %v722 = vlog2.pop %v703
        %v723 = vmul.f32 %v722, 0.6931472
        %v724 = vlog2.pop %v704
        %v725 = vmul.f32 %v724, 0.6931472
        %v726 = vlog2.pop %v705
        %v727 = vmul.f32 %v726, 0.6931472
        %v728 = vlog2.pop %v706
        %v729 = vmul.f32 %v728, 0.6931472
        %v730 = vlog2.pop %v707
        %v731 = vmul.f32 %v730, 0.6931472
        %v732 = vlog2.pop %v708
        %v733 = vmul.f32 %v732, 0.6931472
        %v734 = vlog2.pop %v709
        %v735 = vmul.f32 %v734, 0.6931472
        %v736 = vlog2.pop %v710
        %v737 = vmul.f32 %v736, 0.6931472
        %v738 = vlog2.pop %v711
        %v739 = vmul.f32 %v738, 0.6931472
        %v740 = vlog2.pop %v712
        %v741 = vmul.f32 %v740, 0.6931472
        %v742 = vlog2.pop %v713
        %v743 = vmul.f32 %v742, 0.6931472
        %v744 = vlog2.pop %v714
        %v745 = vmul.f32 %v744, 0.6931472
        %v746 = vlog2.pop %v715
        %v747 = vmul.f32 %v746, 0.6931472
        %v748 = vld [vmem:[%s3] sm:$0xff]
        %v749 = vld [vmem:[%s3 + $0x8] sm:$0xff]
        %v750 = vld [vmem:[%s3 + $0x10] sm:$0xff]
        %v751 = vld [vmem:[%s3 + $0x18] sm:$0xff]
        %v752 = vld [vmem:[%s3 + $0x20] sm:$0xff]
        %v753 = vld [vmem:[%s3 + $0x28] sm:$0xff]
        %v754 = vld [vmem:[%s3 + $0x30] sm:$0xff]
        %v755 = vld [vmem:[%s3 + $0x38] sm:$0xff]
        %v756 = vld [vmem:[%s3 + $0x40] sm:$0xff]
        %v757 = vld [vmem:[%s3 + $0x48] sm:$0xff]
        %v758 = vld [vmem:[%s3 + $0x50] sm:$0xff]
        %v759 = vld [vmem:[%s3 + $0x58] sm:$0xff]
        %v760 = vld [vmem:[%s3 + $0x60] sm:$0xff]
        %v761 = vld [vmem:[%s3 + $0x68] sm:$0xff]
        %v762 = vld [vmem:[%s3 + $0x70] sm:$0xff]
        %v763 = vld [vmem:[%s3 + $0x78] sm:$0xff]
        %765 = vset.pattern.permute.xlu0 0
        %766 = vperm.xlu0 %765, %v748
        %v767 = vpop.permute.xlu0 %766
        %770 = vset.pattern.permute.xlu0 0
        %771 = vperm.xlu0 %770, %v749
        %v772 = vpop.permute.xlu0 %771
        %775 = vset.pattern.permute.xlu0 0
        %776 = vperm.xlu0 %775, %v750
        %v777 = vpop.permute.xlu0 %776
        %780 = vset.pattern.permute.xlu0 0
        %781 = vperm.xlu0 %780, %v751
        %v782 = vpop.permute.xlu0 %781
        %785 = vset.pattern.permute.xlu0 0
        %786 = vperm.xlu0 %785, %v752
        %v787 = vpop.permute.xlu0 %786
        %790 = vset.pattern.permute.xlu0 0
        %791 = vperm.xlu0 %790, %v753
        %v792 = vpop.permute.xlu0 %791
        %795 = vset.pattern.permute.xlu0 0
        %796 = vperm.xlu0 %795, %v754
        %v797 = vpop.permute.xlu0 %796
        %800 = vset.pattern.permute.xlu0 0
        %801 = vperm.xlu0 %800, %v755
        %v802 = vpop.permute.xlu0 %801
        %805 = vset.pattern.permute.xlu0 0
        %806 = vperm.xlu0 %805, %v756
        %v807 = vpop.permute.xlu0 %806
        %810 = vset.pattern.permute.xlu0 0
        %811 = vperm.xlu0 %810, %v757
        %v812 = vpop.permute.xlu0 %811
        %815 = vset.pattern.permute.xlu0 0
        %816 = vperm.xlu0 %815, %v758
        %v817 = vpop.permute.xlu0 %816
        %820 = vset.pattern.permute.xlu0 0
        %821 = vperm.xlu0 %820, %v759
        %v822 = vpop.permute.xlu0 %821
        %825 = vset.pattern.permute.xlu0 0
        %826 = vperm.xlu0 %825, %v760
        %v827 = vpop.permute.xlu0 %826
        %830 = vset.pattern.permute.xlu0 0
        %831 = vperm.xlu0 %830, %v761
        %v832 = vpop.permute.xlu0 %831
        %835 = vset.pattern.permute.xlu0 0
        %836 = vperm.xlu0 %835, %v762
        %v837 = vpop.permute.xlu0 %836
        %840 = vset.pattern.permute.xlu0 0
        %841 = vperm.xlu0 %840, %v763
        %v842 = vpop.permute.xlu0 %841
        %v844 = vmul.f32 %v717, %v767
        %v845 = vmul.f32 %v719, %v772
        %v846 = vmul.f32 %v721, %v777
        %v847 = vmul.f32 %v723, %v782
        %v848 = vmul.f32 %v725, %v787
        %v849 = vmul.f32 %v727, %v792
        %v850 = vmul.f32 %v729, %v797
        %v851 = vmul.f32 %v731, %v802
        %v852 = vmul.f32 %v733, %v807
        %v853 = vmul.f32 %v735, %v812
        %v854 = vmul.f32 %v737, %v817
        %v855 = vmul.f32 %v739, %v822
        %v856 = vmul.f32 %v741, %v827
        %v857 = vmul.f32 %v743, %v832
        %v858 = vmul.f32 %v745, %v837
        %v859 = vmul.f32 %v747, %v842
        %v860 = vrot.slane %v844, 4
        %v861 = vadd.f32 %v844, %v860
        %v862 = vrot.slane %v861, 2
        %v863 = vadd.f32 %v861, %v862
        %v864 = vrot.slane %v863, 1
        %v865 = vadd.f32 %v863, %v864
        %v866 = vrot.slane %v845, 4
        %v867 = vadd.f32 %v845, %v866
        %v868 = vrot.slane %v867, 2
        %v869 = vadd.f32 %v867, %v868
        %v870 = vrot.slane %v869, 1
        %v871 = vadd.f32 %v869, %v870
        %v872 = vrot.slane %v846, 4
        %v873 = vadd.f32 %v846, %v872
        %v874 = vrot.slane %v873, 2
        %v875 = vadd.f32 %v873, %v874
        %v876 = vrot.slane %v875, 1
        %v877 = vadd.f32 %v875, %v876
        %v878 = vrot.slane %v847, 4
        %v879 = vadd.f32 %v847, %v878
        %v880 = vrot.slane %v879, 2
        %v881 = vadd.f32 %v879, %v880
        %v882 = vrot.slane %v881, 1
        %v883 = vadd.f32 %v881, %v882
        %v884 = vrot.slane %v848, 4
        %v885 = vadd.f32 %v848, %v884
        %v886 = vrot.slane %v885, 2
        %v887 = vadd.f32 %v885, %v886
        %v888 = vrot.slane %v887, 1
        %v889 = vadd.f32 %v887, %v888
        %v890 = vrot.slane %v849, 4
        %v891 = vadd.f32 %v849, %v890
        %v892 = vrot.slane %v891, 2
        %v893 = vadd.f32 %v891, %v892
        %v894 = vrot.slane %v893, 1
        %v895 = vadd.f32 %v893, %v894
        %v896 = vrot.slane %v850, 4
        %v897 = vadd.f32 %v850, %v896
        %v898 = vrot.slane %v897, 2
        %v899 = vadd.f32 %v897, %v898
        %v900 = vrot.slane %v899, 1
        %v901 = vadd.f32 %v899, %v900
        %v902 = vrot.slane %v851, 4
        %v903 = vadd.f32 %v851, %v902
        %v904 = vrot.slane %v903, 2
        %v905 = vadd.f32 %v903, %v904
        %v906 = vrot.slane %v905, 1
        %v907 = vadd.f32 %v905, %v906
        %v908 = vrot.slane %v852, 4
        %v909 = vadd.f32 %v852, %v908
        %v910 = vrot.slane %v909, 2
        %v911 = vadd.f32 %v909, %v910
        %v912 = vrot.slane %v911, 1
        %v913 = vadd.f32 %v911, %v912
        %v914 = vrot.slane %v853, 4
        %v915 = vadd.f32 %v853, %v914
        %v916 = vrot.slane %v915, 2
        %v917 = vadd.f32 %v915, %v916
        %v918 = vrot.slane %v917, 1
        %v919 = vadd.f32 %v917, %v918
        %v920 = vrot.slane %v854, 4
        %v921 = vadd.f32 %v854, %v920
        %v922 = vrot.slane %v921, 2
        %v923 = vadd.f32 %v921, %v922
        %v924 = vrot.slane %v923, 1
        %v925 = vadd.f32 %v923, %v924
        %v926 = vrot.slane %v855, 4
        %v927 = vadd.f32 %v855, %v926
        %v928 = vrot.slane %v927, 2
        %v929 = vadd.f32 %v927, %v928
        %v930 = vrot.slane %v929, 1
        %v931 = vadd.f32 %v929, %v930
        %v932 = vrot.slane %v856, 4
        %v933 = vadd.f32 %v856, %v932
        %v934 = vrot.slane %v933, 2
        %v935 = vadd.f32 %v933, %v934
        %v936 = vrot.slane %v935, 1
        %v937 = vadd.f32 %v935, %v936
        %v938 = vrot.slane %v857, 4
        %v939 = vadd.f32 %v857, %v938
        %v940 = vrot.slane %v939, 2
        %v941 = vadd.f32 %v939, %v940
        %v942 = vrot.slane %v941, 1
        %v943 = vadd.f32 %v941, %v942
        %v944 = vrot.slane %v858, 4
        %v945 = vadd.f32 %v858, %v944
        %v946 = vrot.slane %v945, 2
        %v947 = vadd.f32 %v945, %v946
        %v948 = vrot.slane %v947, 1
        %v949 = vadd.f32 %v947, %v948
        %v950 = vrot.slane %v859, 4
        %v951 = vadd.f32 %v859, %v950
        %v952 = vrot.slane %v951, 2
        %v953 = vadd.f32 %v951, %v952
        %v954 = vrot.slane %v953, 1
        %v955 = vadd.f32 %v953, %v954
        %v972 = vadd.f32 %v865, %v235
        %v973 = vadd.f32 %v871, %v239
        %v974 = vadd.f32 %v877, %v240
        %v975 = vadd.f32 %v883, %v241
        %v976 = vadd.f32 %v889, %v242
        %v977 = vadd.f32 %v895, %v243
        %v978 = vadd.f32 %v901, %v244
        %v979 = vadd.f32 %v907, %v245
        %v980 = vadd.f32 %v913, %v236
        %v981 = vadd.f32 %v919, %v246
        %v982 = vadd.f32 %v925, %v247
        %v983 = vadd.f32 %v931, %v248
        %v984 = vadd.f32 %v937, %v249
        %v985 = vadd.f32 %v943, %v250
        %v986 = vadd.f32 %v949, %v251
        %v987 = vadd.f32 %v955, %v252
        %v1004 = vrot.slane %v973, 7
        %vm1005 = vcmask 1041409
        %v1006 = vsel %vm1005, %v1004, %v972
        %v1007 = vrot.slane %v974, 6
        %vm1008 = vcmask 1042434
        %v1009 = vsel %vm1008, %v1007, %v1006
        %v1010 = vrot.slane %v975, 5
        %vm1011 = vcmask 1043459
        %v1012 = vsel %vm1011, %v1010, %v1009
        %v1013 = vrot.slane %v976, 4
        %vm1014 = vcmask 1044484
        %v1015 = vsel %vm1014, %v1013, %v1012
        %v1016 = vrot.slane %v977, 3
        %vm1017 = vcmask 1045509
        %v1018 = vsel %vm1017, %v1016, %v1015
        %v1019 = vrot.slane %v978, 2
        %vm1020 = vcmask 1046534
        %v1021 = vsel %vm1020, %v1019, %v1018
        %v1022 = vrot.slane %v979, 1
        %vm1023 = vcmask 1047559
        %v1024 = vsel %vm1023, %v1022, %v1021
        %v1025 = vrot.slane %v981, 7
        %v1026 = vsel %vm1005, %v1025, %v980
        %v1027 = vrot.slane %v982, 6
        %v1028 = vsel %vm1008, %v1027, %v1026
        %v1029 = vrot.slane %v983, 5
        %v1030 = vsel %vm1011, %v1029, %v1028
        %v1031 = vrot.slane %v984, 4
        %v1032 = vsel %vm1014, %v1031, %v1030
        %v1033 = vrot.slane %v985, 3
        %v1034 = vsel %vm1017, %v1033, %v1032
        %v1035 = vrot.slane %v986, 2
        %v1036 = vsel %vm1020, %v1035, %v1034
        %v1037 = vrot.slane %v987, 1
        %v1038 = vsel %vm1023, %v1037, %v1036
        %1041 = vst [vmem:[%s234] sm:$0xff] %v1024
        %1042 = vst [vmem:[%s234 + $0x8] sm:$0xff] %v1038
        %v1043 = vsub.f32 %v865, %v844
        %v1044 = vsub.f32 %v871, %v845
        %v1045 = vsub.f32 %v877, %v846
        %v1046 = vsub.f32 %v883, %v847
        %v1047 = vsub.f32 %v889, %v848
        %v1048 = vsub.f32 %v895, %v849
        %v1049 = vsub.f32 %v901, %v850
        %v1050 = vsub.f32 %v907, %v851
        %v1051 = vsub.f32 %v913, %v852
        %v1052 = vsub.f32 %v919, %v853
        %v1053 = vsub.f32 %v925, %v854
        %v1054 = vsub.f32 %v931, %v855
        %v1055 = vsub.f32 %v937, %v856
        %v1056 = vsub.f32 %v943, %v857
        %v1057 = vsub.f32 %v949, %v858
        %v1058 = vsub.f32 %v955, %v859
        %s1059 = scalar_lea.vmem %s2, 128
        %v1060 = vld [vmem:[%s1059] sm:$0xff]
        %v1061 = vld [vmem:[%s1059 + $0x8] sm:$0xff]
        %v1062 = vld [vmem:[%s1059 + $0x10] sm:$0xff]
        %v1063 = vld [vmem:[%s1059 + $0x18] sm:$0xff]
        %v1064 = vld [vmem:[%s1059 + $0x20] sm:$0xff]
        %v1065 = vld [vmem:[%s1059 + $0x28] sm:$0xff]
        %v1066 = vld [vmem:[%s1059 + $0x30] sm:$0xff]
        %v1067 = vld [vmem:[%s1059 + $0x38] sm:$0xff]
        %v1068 = vld [vmem:[%s1059 + $0x40] sm:$0xff]
        %v1069 = vld [vmem:[%s1059 + $0x48] sm:$0xff]
        %v1070 = vld [vmem:[%s1059 + $0x50] sm:$0xff]
        %v1071 = vld [vmem:[%s1059 + $0x58] sm:$0xff]
        %v1072 = vld [vmem:[%s1059 + $0x60] sm:$0xff]
        %v1073 = vld [vmem:[%s1059 + $0x68] sm:$0xff]
        %v1074 = vld [vmem:[%s1059 + $0x70] sm:$0xff]
        %v1075 = vld [vmem:[%s1059 + $0x78] sm:$0xff]
        %1077 = vset.pattern.permute.xlu0 0
        %1078 = vperm.xlu0 %1077, %v1060
        %v1079 = vpop.permute.xlu0 %1078
        %1082 = vset.pattern.permute.xlu0 0
        %1083 = vperm.xlu0 %1082, %v1061
        %v1084 = vpop.permute.xlu0 %1083
        %1087 = vset.pattern.permute.xlu0 0
        %1088 = vperm.xlu0 %1087, %v1062
        %v1089 = vpop.permute.xlu0 %1088
        %1092 = vset.pattern.permute.xlu0 0
        %1093 = vperm.xlu0 %1092, %v1063
        %v1094 = vpop.permute.xlu0 %1093
        %1097 = vset.pattern.permute.xlu0 0
        %1098 = vperm.xlu0 %1097, %v1064
        %v1099 = vpop.permute.xlu0 %1098
        %1102 = vset.pattern.permute.xlu0 0
        %1103 = vperm.xlu0 %1102, %v1065
        %v1104 = vpop.permute.xlu0 %1103
        %1107 = vset.pattern.permute.xlu0 0
        %1108 = vperm.xlu0 %1107, %v1066
        %v1109 = vpop.permute.xlu0 %1108
        %1112 = vset.pattern.permute.xlu0 0
        %1113 = vperm.xlu0 %1112, %v1067
        %v1114 = vpop.permute.xlu0 %1113
        %1117 = vset.pattern.permute.xlu0 0
        %1118 = vperm.xlu0 %1117, %v1068
        %v1119 = vpop.permute.xlu0 %1118
        %1122 = vset.pattern.permute.xlu0 0
        %1123 = vperm.xlu0 %1122, %v1069
        %v1124 = vpop.permute.xlu0 %1123
        %1127 = vset.pattern.permute.xlu0 0
        %1128 = vperm.xlu0 %1127, %v1070
        %v1129 = vpop.permute.xlu0 %1128
        %1132 = vset.pattern.permute.xlu0 0
        %1133 = vperm.xlu0 %1132, %v1071
        %v1134 = vpop.permute.xlu0 %1133
        %1137 = vset.pattern.permute.xlu0 0
        %1138 = vperm.xlu0 %1137, %v1072
        %v1139 = vpop.permute.xlu0 %1138
        %1142 = vset.pattern.permute.xlu0 0
        %1143 = vperm.xlu0 %1142, %v1073
        %v1144 = vpop.permute.xlu0 %1143
        %1147 = vset.pattern.permute.xlu0 0
        %1148 = vperm.xlu0 %1147, %v1074
        %v1149 = vpop.permute.xlu0 %1148
        %1152 = vset.pattern.permute.xlu0 0
        %1153 = vperm.xlu0 %1152, %v1075
        %v1154 = vpop.permute.xlu0 %1153
        %v1156 = vmul.f32 %v1043, %v1079
        %v1157 = vmul.f32 %v1044, %v1084
        %v1158 = vmul.f32 %v1045, %v1089
        %v1159 = vmul.f32 %v1046, %v1094
        %v1160 = vmul.f32 %v1047, %v1099
        %v1161 = vmul.f32 %v1048, %v1104
        %v1162 = vmul.f32 %v1049, %v1109
        %v1163 = vmul.f32 %v1050, %v1114
        %v1164 = vmul.f32 %v1051, %v1119
        %v1165 = vmul.f32 %v1052, %v1124
        %v1166 = vmul.f32 %v1053, %v1129
        %v1167 = vmul.f32 %v1054, %v1134
        %v1168 = vmul.f32 %v1055, %v1139
        %v1169 = vmul.f32 %v1056, %v1144
        %v1170 = vmul.f32 %v1057, %v1149
        %v1171 = vmul.f32 %v1058, %v1154
        %v1172 = vadd.f32 %v1156, %v253
        %v1173 = vadd.f32 %v1157, %v254
        %v1174 = vadd.f32 %v1158, %v255
        %v1175 = vadd.f32 %v1159, %v256
        %v1176 = vadd.f32 %v1160, %v257
        %v1177 = vadd.f32 %v1161, %v258
        %v1178 = vadd.f32 %v1162, %v259
        %v1179 = vadd.f32 %v1163, %v260
        %v1180 = vadd.f32 %v1164, %v261
        %v1181 = vadd.f32 %v1165, %v262
        %v1182 = vadd.f32 %v1166, %v263
        %v1183 = vadd.f32 %v1167, %v264
        %v1184 = vadd.f32 %v1168, %v265
        %v1185 = vadd.f32 %v1169, %v266
        %v1186 = vadd.f32 %v1170, %v267
        %v1187 = vadd.f32 %v1171, %v268
        %v1188 = vmul.f32 %v1172, 0.5
        %v1189 = vmul.f32 %v1173, 0.5
        %v1190 = vmul.f32 %v1174, 0.5
        %v1191 = vmul.f32 %v1175, 0.5
        %v1192 = vmul.f32 %v1176, 0.5
        %v1193 = vmul.f32 %v1177, 0.5
        %v1194 = vmul.f32 %v1178, 0.5
        %v1195 = vmul.f32 %v1179, 0.5
        %v1196 = vmul.f32 %v1180, 0.5
        %v1197 = vmul.f32 %v1181, 0.5
        %v1198 = vmul.f32 %v1182, 0.5
        %v1199 = vmul.f32 %v1183, 0.5
        %v1200 = vmul.f32 %v1184, 0.5
        %v1201 = vmul.f32 %v1185, 0.5
        %v1202 = vmul.f32 %v1186, 0.5
        %v1203 = vmul.f32 %v1187, 0.5
        %v1204 = vtanh.pop %v1188
        %v1205 = vtanh.pop %v1189
        %v1206 = vtanh.pop %v1190
        %v1207 = vtanh.pop %v1191
        %v1208 = vtanh.pop %v1192
        %v1209 = vtanh.pop %v1193
        %v1210 = vtanh.pop %v1194
        %v1211 = vtanh.pop %v1195
        %v1212 = vtanh.pop %v1196
        %v1213 = vtanh.pop %v1197
        %v1214 = vtanh.pop %v1198
        %v1215 = vtanh.pop %v1199
        %v1216 = vtanh.pop %v1200
        %v1217 = vtanh.pop %v1201
        %v1218 = vtanh.pop %v1202
        %v1219 = vtanh.pop %v1203
        %v1220 = vand.u32 2147483647, %v1204
        %v1221 = vand.u32 2147483647, %v1205
        %v1222 = vand.u32 2147483647, %v1206
        %v1223 = vand.u32 2147483647, %v1207
        %v1224 = vand.u32 2147483647, %v1208
        %v1225 = vand.u32 2147483647, %v1209
        %v1226 = vand.u32 2147483647, %v1210
        %v1227 = vand.u32 2147483647, %v1211
        %v1228 = vand.u32 2147483647, %v1212
        %v1229 = vand.u32 2147483647, %v1213
        %v1230 = vand.u32 2147483647, %v1214
        %v1231 = vand.u32 2147483647, %v1215
        %v1232 = vand.u32 2147483647, %v1216
        %v1233 = vand.u32 2147483647, %v1217
        %v1234 = vand.u32 2147483647, %v1218
        %v1235 = vand.u32 2147483647, %v1219
        %v1236 = vmax.f32 %v1220, 1e-12
        %v1237 = vmax.f32 %v1221, 1e-12
        %v1238 = vmax.f32 %v1222, 1e-12
        %v1239 = vmax.f32 %v1223, 1e-12
        %v1240 = vmax.f32 %v1224, 1e-12
        %v1241 = vmax.f32 %v1225, 1e-12
        %v1242 = vmax.f32 %v1226, 1e-12
        %v1243 = vmax.f32 %v1227, 1e-12
        %v1244 = vmax.f32 %v1228, 1e-12
        %v1245 = vmax.f32 %v1229, 1e-12
        %v1246 = vmax.f32 %v1230, 1e-12
        %v1247 = vmax.f32 %v1231, 1e-12
        %v1248 = vmax.f32 %v1232, 1e-12
        %v1249 = vmax.f32 %v1233, 1e-12
        %v1250 = vmax.f32 %v1234, 1e-12
        %v1251 = vmax.f32 %v1235, 1e-12
        %vm1252 = vcmp.ge.f32.partialorder %v1204, 0.0
        %vm1253 = vcmp.ge.f32.partialorder %v1205, 0.0
        %vm1254 = vcmp.ge.f32.partialorder %v1206, 0.0
        %vm1255 = vcmp.ge.f32.partialorder %v1207, 0.0
        %vm1256 = vcmp.ge.f32.partialorder %v1208, 0.0
        %vm1257 = vcmp.ge.f32.partialorder %v1209, 0.0
        %vm1258 = vcmp.ge.f32.partialorder %v1210, 0.0
        %vm1259 = vcmp.ge.f32.partialorder %v1211, 0.0
        %vm1260 = vcmp.ge.f32.partialorder %v1212, 0.0
        %vm1261 = vcmp.ge.f32.partialorder %v1213, 0.0
        %vm1262 = vcmp.ge.f32.partialorder %v1214, 0.0
        %vm1263 = vcmp.ge.f32.partialorder %v1215, 0.0
        %vm1264 = vcmp.ge.f32.partialorder %v1216, 0.0
        %vm1265 = vcmp.ge.f32.partialorder %v1217, 0.0
        %vm1266 = vcmp.ge.f32.partialorder %v1218, 0.0
        %vm1267 = vcmp.ge.f32.partialorder %v1219, 0.0
        %v1268 = vsub.f32 0.0, %v1236
        %v1269 = vsub.f32 0.0, %v1237
        %v1270 = vsub.f32 0.0, %v1238
        %v1271 = vsub.f32 0.0, %v1239
        %v1272 = vsub.f32 0.0, %v1240
        %v1273 = vsub.f32 0.0, %v1241
        %v1274 = vsub.f32 0.0, %v1242
        %v1275 = vsub.f32 0.0, %v1243
        %v1276 = vsub.f32 0.0, %v1244
        %v1277 = vsub.f32 0.0, %v1245
        %v1278 = vsub.f32 0.0, %v1246
        %v1279 = vsub.f32 0.0, %v1247
        %v1280 = vsub.f32 0.0, %v1248
        %v1281 = vsub.f32 0.0, %v1249
        %v1282 = vsub.f32 0.0, %v1250
        %v1283 = vsub.f32 0.0, %v1251
        %v1284 = vsel %vm1252, %v1236, %v1268
        %v1285 = vsel %vm1253, %v1237, %v1269
        %v1286 = vsel %vm1254, %v1238, %v1270
        %v1287 = vsel %vm1255, %v1239, %v1271
        %v1288 = vsel %vm1256, %v1240, %v1272
        %v1289 = vsel %vm1257, %v1241, %v1273
        %v1290 = vsel %vm1258, %v1242, %v1274
        %v1291 = vsel %vm1259, %v1243, %v1275
        %v1292 = vsel %vm1260, %v1244, %v1276
        %v1293 = vsel %vm1261, %v1245, %v1277
        %v1294 = vsel %vm1262, %v1246, %v1278
        %v1295 = vsel %vm1263, %v1247, %v1279
        %v1296 = vsel %vm1264, %v1248, %v1280
        %v1297 = vsel %vm1265, %v1249, %v1281
        %v1298 = vsel %vm1266, %v1250, %v1282
        %v1299 = vsel %vm1267, %v1251, %v1283
        %v1300 = vsel %vm381, %v1284, 1.0
        %v1301 = vsel %vm382, %v1285, 1.0
        %v1302 = vsel %vm383, %v1286, 1.0
        %v1303 = vsel %vm384, %v1287, 1.0
        %v1304 = vsel %vm385, %v1288, 1.0
        %v1305 = vsel %vm386, %v1289, 1.0
        %v1306 = vsel %vm387, %v1290, 1.0
        %v1307 = vsel %vm388, %v1291, 1.0
        %v1308 = vsel %vm389, %v1292, 1.0
        %v1309 = vsel %vm390, %v1293, 1.0
        %v1310 = vsel %vm391, %v1294, 1.0
        %v1311 = vsel %vm392, %v1295, 1.0
        %v1312 = vsel %vm393, %v1296, 1.0
        %v1313 = vsel %vm394, %v1297, 1.0
        %v1314 = vsel %vm395, %v1298, 1.0
        %v1315 = vsel %vm396, %v1299, 1.0
        %v1316 = vmul.f32 %v1300, %v1308
        %v1317 = vmul.f32 %v1301, %v1309
        %v1318 = vmul.f32 %v1302, %v1310
        %v1319 = vmul.f32 %v1303, %v1311
        %v1320 = vmul.f32 %v1304, %v1312
        %v1321 = vmul.f32 %v1305, %v1313
        %v1322 = vmul.f32 %v1306, %v1314
        %v1323 = vmul.f32 %v1307, %v1315
        %v1324 = vmul.f32 %v1316, %v1320
        %v1325 = vmul.f32 %v1317, %v1321
        %v1326 = vmul.f32 %v1318, %v1322
        %v1327 = vmul.f32 %v1319, %v1323
        %v1328 = vmul.f32 %v1324, %v1326
        %v1329 = vmul.f32 %v1325, %v1327
        %v1330 = vmul.f32 %v1328, %v1329
        %v1331 = vadd.f32 %v1300, %v1330
        %v1332 = vadd.f32 %v1301, %v1330
        %v1333 = vadd.f32 %v1302, %v1330
        %v1334 = vadd.f32 %v1303, %v1330
        %v1335 = vadd.f32 %v1304, %v1330
        %v1336 = vadd.f32 %v1305, %v1330
        %v1337 = vadd.f32 %v1306, %v1330
        %v1338 = vadd.f32 %v1307, %v1330
        %v1339 = vadd.f32 %v1308, %v1330
        %v1340 = vadd.f32 %v1309, %v1330
        %v1341 = vadd.f32 %v1310, %v1330
        %v1342 = vadd.f32 %v1311, %v1330
        %v1343 = vadd.f32 %v1312, %v1330
        %v1344 = vadd.f32 %v1313, %v1330
        %v1345 = vadd.f32 %v1314, %v1330
        %v1346 = vadd.f32 %v1315, %v1330
        %v1347 = vsub.f32 %v1300, %v1330
        %v1348 = vsub.f32 %v1301, %v1330
        %v1349 = vsub.f32 %v1302, %v1330
        %v1350 = vsub.f32 %v1303, %v1330
        %v1351 = vsub.f32 %v1304, %v1330
        %v1352 = vsub.f32 %v1305, %v1330
        %v1353 = vsub.f32 %v1306, %v1330
        %v1354 = vsub.f32 %v1307, %v1330
        %v1355 = vsub.f32 %v1308, %v1330
        %v1356 = vsub.f32 %v1309, %v1330
        %v1357 = vsub.f32 %v1310, %v1330
        %v1358 = vsub.f32 %v1311, %v1330
        %v1359 = vsub.f32 %v1312, %v1330
        %v1360 = vsub.f32 %v1313, %v1330
        %v1361 = vsub.f32 %v1314, %v1330
        %v1362 = vsub.f32 %v1315, %v1330
        %v1363 = vand.u32 2147483647, %v1347
        %v1364 = vand.u32 2147483647, %v1348
        %v1365 = vand.u32 2147483647, %v1349
        %v1366 = vand.u32 2147483647, %v1350
        %v1367 = vand.u32 2147483647, %v1351
        %v1368 = vand.u32 2147483647, %v1352
        %v1369 = vand.u32 2147483647, %v1353
        %v1370 = vand.u32 2147483647, %v1354
        %v1371 = vand.u32 2147483647, %v1355
        %v1372 = vand.u32 2147483647, %v1356
        %v1373 = vand.u32 2147483647, %v1357
        %v1374 = vand.u32 2147483647, %v1358
        %v1375 = vand.u32 2147483647, %v1359
        %v1376 = vand.u32 2147483647, %v1360
        %v1377 = vand.u32 2147483647, %v1361
        %v1378 = vand.u32 2147483647, %v1362
        %v1379 = vmax.f32 %v1363, 1e-12
        %v1380 = vmax.f32 %v1364, 1e-12
        %v1381 = vmax.f32 %v1365, 1e-12
        %v1382 = vmax.f32 %v1366, 1e-12
        %v1383 = vmax.f32 %v1367, 1e-12
        %v1384 = vmax.f32 %v1368, 1e-12
        %v1385 = vmax.f32 %v1369, 1e-12
        %v1386 = vmax.f32 %v1370, 1e-12
        %v1387 = vmax.f32 %v1371, 1e-12
        %v1388 = vmax.f32 %v1372, 1e-12
        %v1389 = vmax.f32 %v1373, 1e-12
        %v1390 = vmax.f32 %v1374, 1e-12
        %v1391 = vmax.f32 %v1375, 1e-12
        %v1392 = vmax.f32 %v1376, 1e-12
        %v1393 = vmax.f32 %v1377, 1e-12
        %v1394 = vmax.f32 %v1378, 1e-12
        %vm1395 = vcmp.ge.f32.partialorder %v1347, 0.0
        %vm1396 = vcmp.ge.f32.partialorder %v1348, 0.0
        %vm1397 = vcmp.ge.f32.partialorder %v1349, 0.0
        %vm1398 = vcmp.ge.f32.partialorder %v1350, 0.0
        %vm1399 = vcmp.ge.f32.partialorder %v1351, 0.0
        %vm1400 = vcmp.ge.f32.partialorder %v1352, 0.0
        %vm1401 = vcmp.ge.f32.partialorder %v1353, 0.0
        %vm1402 = vcmp.ge.f32.partialorder %v1354, 0.0
        %vm1403 = vcmp.ge.f32.partialorder %v1355, 0.0
        %vm1404 = vcmp.ge.f32.partialorder %v1356, 0.0
        %vm1405 = vcmp.ge.f32.partialorder %v1357, 0.0
        %vm1406 = vcmp.ge.f32.partialorder %v1358, 0.0
        %vm1407 = vcmp.ge.f32.partialorder %v1359, 0.0
        %vm1408 = vcmp.ge.f32.partialorder %v1360, 0.0
        %vm1409 = vcmp.ge.f32.partialorder %v1361, 0.0
        %vm1410 = vcmp.ge.f32.partialorder %v1362, 0.0
        %v1411 = vsub.f32 0.0, %v1379
        %v1412 = vsub.f32 0.0, %v1380
        %v1413 = vsub.f32 0.0, %v1381
        %v1414 = vsub.f32 0.0, %v1382
        %v1415 = vsub.f32 0.0, %v1383
        %v1416 = vsub.f32 0.0, %v1384
        %v1417 = vsub.f32 0.0, %v1385
        %v1418 = vsub.f32 0.0, %v1386
        %v1419 = vsub.f32 0.0, %v1387
        %v1420 = vsub.f32 0.0, %v1388
        %v1421 = vsub.f32 0.0, %v1389
        %v1422 = vsub.f32 0.0, %v1390
        %v1423 = vsub.f32 0.0, %v1391
        %v1424 = vsub.f32 0.0, %v1392
        %v1425 = vsub.f32 0.0, %v1393
        %v1426 = vsub.f32 0.0, %v1394
        %v1427 = vsel %vm1395, %v1379, %v1411
        %v1428 = vsel %vm1396, %v1380, %v1412
        %v1429 = vsel %vm1397, %v1381, %v1413
        %v1430 = vsel %vm1398, %v1382, %v1414
        %v1431 = vsel %vm1399, %v1383, %v1415
        %v1432 = vsel %vm1400, %v1384, %v1416
        %v1433 = vsel %vm1401, %v1385, %v1417
        %v1434 = vsel %vm1402, %v1386, %v1418
        %v1435 = vsel %vm1403, %v1387, %v1419
        %v1436 = vsel %vm1404, %v1388, %v1420
        %v1437 = vsel %vm1405, %v1389, %v1421
        %v1438 = vsel %vm1406, %v1390, %v1422
        %v1439 = vsel %vm1407, %v1391, %v1423
        %v1440 = vsel %vm1408, %v1392, %v1424
        %v1441 = vsel %vm1409, %v1393, %v1425
        %v1442 = vsel %vm1410, %v1394, %v1426
        %v1443 = vrcp.pop %v1427
        %v1444 = vrcp.pop %v1428
        %v1445 = vrcp.pop %v1429
        %v1446 = vrcp.pop %v1430
        %v1447 = vrcp.pop %v1431
        %v1448 = vrcp.pop %v1432
        %v1449 = vrcp.pop %v1433
        %v1450 = vrcp.pop %v1434
        %v1451 = vrcp.pop %v1435
        %v1452 = vrcp.pop %v1436
        %v1453 = vrcp.pop %v1437
        %v1454 = vrcp.pop %v1438
        %v1455 = vrcp.pop %v1439
        %v1456 = vrcp.pop %v1440
        %v1457 = vrcp.pop %v1441
        %v1458 = vrcp.pop %v1442
        %v1459 = vmul.f32 %v1331, %v1443
        %v1460 = vmul.f32 %v1332, %v1444
        %v1461 = vmul.f32 %v1333, %v1445
        %v1462 = vmul.f32 %v1334, %v1446
        %v1463 = vmul.f32 %v1335, %v1447
        %v1464 = vmul.f32 %v1336, %v1448
        %v1465 = vmul.f32 %v1337, %v1449
        %v1466 = vmul.f32 %v1338, %v1450
        %v1467 = vmul.f32 %v1339, %v1451
        %v1468 = vmul.f32 %v1340, %v1452
        %v1469 = vmul.f32 %v1341, %v1453
        %v1470 = vmul.f32 %v1342, %v1454
        %v1471 = vmul.f32 %v1343, %v1455
        %v1472 = vmul.f32 %v1344, %v1456
        %v1473 = vmul.f32 %v1345, %v1457
        %v1474 = vmul.f32 %v1346, %v1458
        %v1475 = vmax.f32 %v1459, 5.0000004e-08
        %v1476 = vmax.f32 %v1460, 5.0000004e-08
        %v1477 = vmax.f32 %v1461, 5.0000004e-08
        %v1478 = vmax.f32 %v1462, 5.0000004e-08
        %v1479 = vmax.f32 %v1463, 5.0000004e-08
        %v1480 = vmax.f32 %v1464, 5.0000004e-08
        %v1481 = vmax.f32 %v1465, 5.0000004e-08
        %v1482 = vmax.f32 %v1466, 5.0000004e-08
        %v1483 = vmax.f32 %v1467, 5.0000004e-08
        %v1484 = vmax.f32 %v1468, 5.0000004e-08
        %v1485 = vmax.f32 %v1469, 5.0000004e-08
        %v1486 = vmax.f32 %v1470, 5.0000004e-08
        %v1487 = vmax.f32 %v1471, 5.0000004e-08
        %v1488 = vmax.f32 %v1472, 5.0000004e-08
        %v1489 = vmax.f32 %v1473, 5.0000004e-08
        %v1490 = vmax.f32 %v1474, 5.0000004e-08
        %v1491 = vmin.f32 %v1475, 20000000.0
        %v1492 = vmin.f32 %v1476, 20000000.0
        %v1493 = vmin.f32 %v1477, 20000000.0
        %v1494 = vmin.f32 %v1478, 20000000.0
        %v1495 = vmin.f32 %v1479, 20000000.0
        %v1496 = vmin.f32 %v1480, 20000000.0
        %v1497 = vmin.f32 %v1481, 20000000.0
        %v1498 = vmin.f32 %v1482, 20000000.0
        %v1499 = vmin.f32 %v1483, 20000000.0
        %v1500 = vmin.f32 %v1484, 20000000.0
        %v1501 = vmin.f32 %v1485, 20000000.0
        %v1502 = vmin.f32 %v1486, 20000000.0
        %v1503 = vmin.f32 %v1487, 20000000.0
        %v1504 = vmin.f32 %v1488, 20000000.0
        %v1505 = vmin.f32 %v1489, 20000000.0
        %v1506 = vmin.f32 %v1490, 20000000.0
        %v1507 = vlog2.pop %v1491
        %v1508 = vmul.f32 %v1507, 0.6931472
        %v1509 = vlog2.pop %v1492
        %v1510 = vmul.f32 %v1509, 0.6931472
        %v1511 = vlog2.pop %v1493
        %v1512 = vmul.f32 %v1511, 0.6931472
        %v1513 = vlog2.pop %v1494
        %v1514 = vmul.f32 %v1513, 0.6931472
        %v1515 = vlog2.pop %v1495
        %v1516 = vmul.f32 %v1515, 0.6931472
        %v1517 = vlog2.pop %v1496
        %v1518 = vmul.f32 %v1517, 0.6931472
        %v1519 = vlog2.pop %v1497
        %v1520 = vmul.f32 %v1519, 0.6931472
        %v1521 = vlog2.pop %v1498
        %v1522 = vmul.f32 %v1521, 0.6931472
        %v1523 = vlog2.pop %v1499
        %v1524 = vmul.f32 %v1523, 0.6931472
        %v1525 = vlog2.pop %v1500
        %v1526 = vmul.f32 %v1525, 0.6931472
        %v1527 = vlog2.pop %v1501
        %v1528 = vmul.f32 %v1527, 0.6931472
        %v1529 = vlog2.pop %v1502
        %v1530 = vmul.f32 %v1529, 0.6931472
        %v1531 = vlog2.pop %v1503
        %v1532 = vmul.f32 %v1531, 0.6931472
        %v1533 = vlog2.pop %v1504
        %v1534 = vmul.f32 %v1533, 0.6931472
        %v1535 = vlog2.pop %v1505
        %v1536 = vmul.f32 %v1535, 0.6931472
        %v1537 = vlog2.pop %v1506
        %v1538 = vmul.f32 %v1537, 0.6931472
        %s1539 = scalar_lea.vmem %s3, 128
        %v1540 = vld [vmem:[%s1539] sm:$0xff]
        %v1541 = vld [vmem:[%s1539 + $0x8] sm:$0xff]
        %v1542 = vld [vmem:[%s1539 + $0x10] sm:$0xff]
        %v1543 = vld [vmem:[%s1539 + $0x18] sm:$0xff]
        %v1544 = vld [vmem:[%s1539 + $0x20] sm:$0xff]
        %v1545 = vld [vmem:[%s1539 + $0x28] sm:$0xff]
        %v1546 = vld [vmem:[%s1539 + $0x30] sm:$0xff]
        %v1547 = vld [vmem:[%s1539 + $0x38] sm:$0xff]
        %v1548 = vld [vmem:[%s1539 + $0x40] sm:$0xff]
        %v1549 = vld [vmem:[%s1539 + $0x48] sm:$0xff]
        %v1550 = vld [vmem:[%s1539 + $0x50] sm:$0xff]
        %v1551 = vld [vmem:[%s1539 + $0x58] sm:$0xff]
        %v1552 = vld [vmem:[%s1539 + $0x60] sm:$0xff]
        %v1553 = vld [vmem:[%s1539 + $0x68] sm:$0xff]
        %v1554 = vld [vmem:[%s1539 + $0x70] sm:$0xff]
        %v1555 = vld [vmem:[%s1539 + $0x78] sm:$0xff]
        %1557 = vset.pattern.permute.xlu0 0
        %1558 = vperm.xlu0 %1557, %v1540
        %v1559 = vpop.permute.xlu0 %1558
        %1562 = vset.pattern.permute.xlu0 0
        %1563 = vperm.xlu0 %1562, %v1541
        %v1564 = vpop.permute.xlu0 %1563
        %1567 = vset.pattern.permute.xlu0 0
        %1568 = vperm.xlu0 %1567, %v1542
        %v1569 = vpop.permute.xlu0 %1568
        %1572 = vset.pattern.permute.xlu0 0
        %1573 = vperm.xlu0 %1572, %v1543
        %v1574 = vpop.permute.xlu0 %1573
        %1577 = vset.pattern.permute.xlu0 0
        %1578 = vperm.xlu0 %1577, %v1544
        %v1579 = vpop.permute.xlu0 %1578
        %1582 = vset.pattern.permute.xlu0 0
        %1583 = vperm.xlu0 %1582, %v1545
        %v1584 = vpop.permute.xlu0 %1583
        %1587 = vset.pattern.permute.xlu0 0
        %1588 = vperm.xlu0 %1587, %v1546
        %v1589 = vpop.permute.xlu0 %1588
        %1592 = vset.pattern.permute.xlu0 0
        %1593 = vperm.xlu0 %1592, %v1547
        %v1594 = vpop.permute.xlu0 %1593
        %1597 = vset.pattern.permute.xlu0 0
        %1598 = vperm.xlu0 %1597, %v1548
        %v1599 = vpop.permute.xlu0 %1598
        %1602 = vset.pattern.permute.xlu0 0
        %1603 = vperm.xlu0 %1602, %v1549
        %v1604 = vpop.permute.xlu0 %1603
        %1607 = vset.pattern.permute.xlu0 0
        %1608 = vperm.xlu0 %1607, %v1550
        %v1609 = vpop.permute.xlu0 %1608
        %1612 = vset.pattern.permute.xlu0 0
        %1613 = vperm.xlu0 %1612, %v1551
        %v1614 = vpop.permute.xlu0 %1613
        %1617 = vset.pattern.permute.xlu0 0
        %1618 = vperm.xlu0 %1617, %v1552
        %v1619 = vpop.permute.xlu0 %1618
        %1622 = vset.pattern.permute.xlu0 0
        %1623 = vperm.xlu0 %1622, %v1553
        %v1624 = vpop.permute.xlu0 %1623
        %1627 = vset.pattern.permute.xlu0 0
        %1628 = vperm.xlu0 %1627, %v1554
        %v1629 = vpop.permute.xlu0 %1628
        %1632 = vset.pattern.permute.xlu0 0
        %1633 = vperm.xlu0 %1632, %v1555
        %v1634 = vpop.permute.xlu0 %1633
        %v1636 = vmul.f32 %v1508, %v1559
        %v1637 = vmul.f32 %v1510, %v1564
        %v1638 = vmul.f32 %v1512, %v1569
        %v1639 = vmul.f32 %v1514, %v1574
        %v1640 = vmul.f32 %v1516, %v1579
        %v1641 = vmul.f32 %v1518, %v1584
        %v1642 = vmul.f32 %v1520, %v1589
        %v1643 = vmul.f32 %v1522, %v1594
        %v1644 = vmul.f32 %v1524, %v1599
        %v1645 = vmul.f32 %v1526, %v1604
        %v1646 = vmul.f32 %v1528, %v1609
        %v1647 = vmul.f32 %v1530, %v1614
        %v1648 = vmul.f32 %v1532, %v1619
        %v1649 = vmul.f32 %v1534, %v1624
        %v1650 = vmul.f32 %v1536, %v1629
        %v1651 = vmul.f32 %v1538, %v1634
        %v1652 = vrot.slane %v1636, 4
        %v1653 = vadd.f32 %v1636, %v1652
        %v1654 = vrot.slane %v1653, 2
        %v1655 = vadd.f32 %v1653, %v1654
        %v1656 = vrot.slane %v1655, 1
        %v1657 = vadd.f32 %v1655, %v1656
        %v1658 = vrot.slane %v1637, 4
        %v1659 = vadd.f32 %v1637, %v1658
        %v1660 = vrot.slane %v1659, 2
        %v1661 = vadd.f32 %v1659, %v1660
        %v1662 = vrot.slane %v1661, 1
        %v1663 = vadd.f32 %v1661, %v1662
        %v1664 = vrot.slane %v1638, 4
        %v1665 = vadd.f32 %v1638, %v1664
        %v1666 = vrot.slane %v1665, 2
        %v1667 = vadd.f32 %v1665, %v1666
        %v1668 = vrot.slane %v1667, 1
        %v1669 = vadd.f32 %v1667, %v1668
        %v1670 = vrot.slane %v1639, 4
        %v1671 = vadd.f32 %v1639, %v1670
        %v1672 = vrot.slane %v1671, 2
        %v1673 = vadd.f32 %v1671, %v1672
        %v1674 = vrot.slane %v1673, 1
        %v1675 = vadd.f32 %v1673, %v1674
        %v1676 = vrot.slane %v1640, 4
        %v1677 = vadd.f32 %v1640, %v1676
        %v1678 = vrot.slane %v1677, 2
        %v1679 = vadd.f32 %v1677, %v1678
        %v1680 = vrot.slane %v1679, 1
        %v1681 = vadd.f32 %v1679, %v1680
        %v1682 = vrot.slane %v1641, 4
        %v1683 = vadd.f32 %v1641, %v1682
        %v1684 = vrot.slane %v1683, 2
        %v1685 = vadd.f32 %v1683, %v1684
        %v1686 = vrot.slane %v1685, 1
        %v1687 = vadd.f32 %v1685, %v1686
        %v1688 = vrot.slane %v1642, 4
        %v1689 = vadd.f32 %v1642, %v1688
        %v1690 = vrot.slane %v1689, 2
        %v1691 = vadd.f32 %v1689, %v1690
        %v1692 = vrot.slane %v1691, 1
        %v1693 = vadd.f32 %v1691, %v1692
        %v1694 = vrot.slane %v1643, 4
        %v1695 = vadd.f32 %v1643, %v1694
        %v1696 = vrot.slane %v1695, 2
        %v1697 = vadd.f32 %v1695, %v1696
        %v1698 = vrot.slane %v1697, 1
        %v1699 = vadd.f32 %v1697, %v1698
        %v1700 = vrot.slane %v1644, 4
        %v1701 = vadd.f32 %v1644, %v1700
        %v1702 = vrot.slane %v1701, 2
        %v1703 = vadd.f32 %v1701, %v1702
        %v1704 = vrot.slane %v1703, 1
        %v1705 = vadd.f32 %v1703, %v1704
        %v1706 = vrot.slane %v1645, 4
        %v1707 = vadd.f32 %v1645, %v1706
        %v1708 = vrot.slane %v1707, 2
        %v1709 = vadd.f32 %v1707, %v1708
        %v1710 = vrot.slane %v1709, 1
        %v1711 = vadd.f32 %v1709, %v1710
        %v1712 = vrot.slane %v1646, 4
        %v1713 = vadd.f32 %v1646, %v1712
        %v1714 = vrot.slane %v1713, 2
        %v1715 = vadd.f32 %v1713, %v1714
        %v1716 = vrot.slane %v1715, 1
        %v1717 = vadd.f32 %v1715, %v1716
        %v1718 = vrot.slane %v1647, 4
        %v1719 = vadd.f32 %v1647, %v1718
        %v1720 = vrot.slane %v1719, 2
        %v1721 = vadd.f32 %v1719, %v1720
        %v1722 = vrot.slane %v1721, 1
        %v1723 = vadd.f32 %v1721, %v1722
        %v1724 = vrot.slane %v1648, 4
        %v1725 = vadd.f32 %v1648, %v1724
        %v1726 = vrot.slane %v1725, 2
        %v1727 = vadd.f32 %v1725, %v1726
        %v1728 = vrot.slane %v1727, 1
        %v1729 = vadd.f32 %v1727, %v1728
        %v1730 = vrot.slane %v1649, 4
        %v1731 = vadd.f32 %v1649, %v1730
        %v1732 = vrot.slane %v1731, 2
        %v1733 = vadd.f32 %v1731, %v1732
        %v1734 = vrot.slane %v1733, 1
        %v1735 = vadd.f32 %v1733, %v1734
        %v1736 = vrot.slane %v1650, 4
        %v1737 = vadd.f32 %v1650, %v1736
        %v1738 = vrot.slane %v1737, 2
        %v1739 = vadd.f32 %v1737, %v1738
        %v1740 = vrot.slane %v1739, 1
        %v1741 = vadd.f32 %v1739, %v1740
        %v1742 = vrot.slane %v1651, 4
        %v1743 = vadd.f32 %v1651, %v1742
        %v1744 = vrot.slane %v1743, 2
        %v1745 = vadd.f32 %v1743, %v1744
        %v1746 = vrot.slane %v1745, 1
        %v1747 = vadd.f32 %v1745, %v1746
        %v1748 = vadd.f32 %v1657, %v235
        %v1749 = vadd.f32 %v1663, %v239
        %v1750 = vadd.f32 %v1669, %v240
        %v1751 = vadd.f32 %v1675, %v241
        %v1752 = vadd.f32 %v1681, %v242
        %v1753 = vadd.f32 %v1687, %v243
        %v1754 = vadd.f32 %v1693, %v244
        %v1755 = vadd.f32 %v1699, %v245
        %v1756 = vadd.f32 %v1705, %v236
        %v1757 = vadd.f32 %v1711, %v246
        %v1758 = vadd.f32 %v1717, %v247
        %v1759 = vadd.f32 %v1723, %v248
        %v1760 = vadd.f32 %v1729, %v249
        %v1761 = vadd.f32 %v1735, %v250
        %v1762 = vadd.f32 %v1741, %v251
        %v1763 = vadd.f32 %v1747, %v252
        %v1780 = vrot.slane %v1749, 7
        %v1781 = vsel %vm1005, %v1780, %v1748
        %v1782 = vrot.slane %v1750, 6
        %v1783 = vsel %vm1008, %v1782, %v1781
        %v1784 = vrot.slane %v1751, 5
        %v1785 = vsel %vm1011, %v1784, %v1783
        %v1786 = vrot.slane %v1752, 4
        %v1787 = vsel %vm1014, %v1786, %v1785
        %v1788 = vrot.slane %v1753, 3
        %v1789 = vsel %vm1017, %v1788, %v1787
        %v1790 = vrot.slane %v1754, 2
        %v1791 = vsel %vm1020, %v1790, %v1789
        %v1792 = vrot.slane %v1755, 1
        %v1793 = vsel %vm1023, %v1792, %v1791
        %v1794 = vrot.slane %v1757, 7
        %v1795 = vsel %vm1005, %v1794, %v1756
        %v1796 = vrot.slane %v1758, 6
        %v1797 = vsel %vm1008, %v1796, %v1795
        %v1798 = vrot.slane %v1759, 5
        %v1799 = vsel %vm1011, %v1798, %v1797
        %v1800 = vrot.slane %v1760, 4
        %v1801 = vsel %vm1014, %v1800, %v1799
        %v1802 = vrot.slane %v1761, 3
        %v1803 = vsel %vm1017, %v1802, %v1801
        %v1804 = vrot.slane %v1762, 2
        %v1805 = vsel %vm1020, %v1804, %v1803
        %v1806 = vrot.slane %v1763, 1
        %v1807 = vsel %vm1023, %v1806, %v1805
        %s1810 = scalar_lea.vmem %s234, 16 [#allocation3]
        %1811 = vst [vmem:[%s1810] sm:$0xff] %v1793
        %1812 = vst [vmem:[%s1810 + $0x8] sm:$0xff] %v1807
        %v1813 = vsub.f32 %v1657, %v1636
        %v1814 = vsub.f32 %v1663, %v1637
        %v1815 = vsub.f32 %v1669, %v1638
        %v1816 = vsub.f32 %v1675, %v1639
        %v1817 = vsub.f32 %v1681, %v1640
        %v1818 = vsub.f32 %v1687, %v1641
        %v1819 = vsub.f32 %v1693, %v1642
        %v1820 = vsub.f32 %v1699, %v1643
        %v1821 = vsub.f32 %v1705, %v1644
        %v1822 = vsub.f32 %v1711, %v1645
        %v1823 = vsub.f32 %v1717, %v1646
        %v1824 = vsub.f32 %v1723, %v1647
        %v1825 = vsub.f32 %v1729, %v1648
        %v1826 = vsub.f32 %v1735, %v1649
        %v1827 = vsub.f32 %v1741, %v1650
        %v1828 = vsub.f32 %v1747, %v1651
        %s1829 = scalar_lea.vmem %s2, 256
        %v1830 = vld [vmem:[%s1829] sm:$0xff]
        %v1831 = vld [vmem:[%s1829 + $0x8] sm:$0xff]
        %v1832 = vld [vmem:[%s1829 + $0x10] sm:$0xff]
        %v1833 = vld [vmem:[%s1829 + $0x18] sm:$0xff]
        %v1834 = vld [vmem:[%s1829 + $0x20] sm:$0xff]
        %v1835 = vld [vmem:[%s1829 + $0x28] sm:$0xff]
        %v1836 = vld [vmem:[%s1829 + $0x30] sm:$0xff]
        %v1837 = vld [vmem:[%s1829 + $0x38] sm:$0xff]
        %v1838 = vld [vmem:[%s1829 + $0x40] sm:$0xff]
        %v1839 = vld [vmem:[%s1829 + $0x48] sm:$0xff]
        %v1840 = vld [vmem:[%s1829 + $0x50] sm:$0xff]
        %v1841 = vld [vmem:[%s1829 + $0x58] sm:$0xff]
        %v1842 = vld [vmem:[%s1829 + $0x60] sm:$0xff]
        %v1843 = vld [vmem:[%s1829 + $0x68] sm:$0xff]
        %v1844 = vld [vmem:[%s1829 + $0x70] sm:$0xff]
        %v1845 = vld [vmem:[%s1829 + $0x78] sm:$0xff]
        %1847 = vset.pattern.permute.xlu0 0
        %1848 = vperm.xlu0 %1847, %v1830
        %v1849 = vpop.permute.xlu0 %1848
        %1852 = vset.pattern.permute.xlu0 0
        %1853 = vperm.xlu0 %1852, %v1831
        %v1854 = vpop.permute.xlu0 %1853
        %1857 = vset.pattern.permute.xlu0 0
        %1858 = vperm.xlu0 %1857, %v1832
        %v1859 = vpop.permute.xlu0 %1858
        %1862 = vset.pattern.permute.xlu0 0
        %1863 = vperm.xlu0 %1862, %v1833
        %v1864 = vpop.permute.xlu0 %1863
        %1867 = vset.pattern.permute.xlu0 0
        %1868 = vperm.xlu0 %1867, %v1834
        %v1869 = vpop.permute.xlu0 %1868
        %1872 = vset.pattern.permute.xlu0 0
        %1873 = vperm.xlu0 %1872, %v1835
        %v1874 = vpop.permute.xlu0 %1873
        %1877 = vset.pattern.permute.xlu0 0
        %1878 = vperm.xlu0 %1877, %v1836
        %v1879 = vpop.permute.xlu0 %1878
        %1882 = vset.pattern.permute.xlu0 0
        %1883 = vperm.xlu0 %1882, %v1837
        %v1884 = vpop.permute.xlu0 %1883
        %1887 = vset.pattern.permute.xlu0 0
        %1888 = vperm.xlu0 %1887, %v1838
        %v1889 = vpop.permute.xlu0 %1888
        %1892 = vset.pattern.permute.xlu0 0
        %1893 = vperm.xlu0 %1892, %v1839
        %v1894 = vpop.permute.xlu0 %1893
        %1897 = vset.pattern.permute.xlu0 0
        %1898 = vperm.xlu0 %1897, %v1840
        %v1899 = vpop.permute.xlu0 %1898
        %1902 = vset.pattern.permute.xlu0 0
        %1903 = vperm.xlu0 %1902, %v1841
        %v1904 = vpop.permute.xlu0 %1903
        %1907 = vset.pattern.permute.xlu0 0
        %1908 = vperm.xlu0 %1907, %v1842
        %v1909 = vpop.permute.xlu0 %1908
        %1912 = vset.pattern.permute.xlu0 0
        %1913 = vperm.xlu0 %1912, %v1843
        %v1914 = vpop.permute.xlu0 %1913
        %1917 = vset.pattern.permute.xlu0 0
        %1918 = vperm.xlu0 %1917, %v1844
        %v1919 = vpop.permute.xlu0 %1918
        %1922 = vset.pattern.permute.xlu0 0
        %1923 = vperm.xlu0 %1922, %v1845
        %v1924 = vpop.permute.xlu0 %1923
        %v1926 = vmul.f32 %v1813, %v1849
        %v1927 = vmul.f32 %v1814, %v1854
        %v1928 = vmul.f32 %v1815, %v1859
        %v1929 = vmul.f32 %v1816, %v1864
        %v1930 = vmul.f32 %v1817, %v1869
        %v1931 = vmul.f32 %v1818, %v1874
        %v1932 = vmul.f32 %v1819, %v1879
        %v1933 = vmul.f32 %v1820, %v1884
        %v1934 = vmul.f32 %v1821, %v1889
        %v1935 = vmul.f32 %v1822, %v1894
        %v1936 = vmul.f32 %v1823, %v1899
        %v1937 = vmul.f32 %v1824, %v1904
        %v1938 = vmul.f32 %v1825, %v1909
        %v1939 = vmul.f32 %v1826, %v1914
        %v1940 = vmul.f32 %v1827, %v1919
        %v1941 = vmul.f32 %v1828, %v1924
        %v1942 = vadd.f32 %v1926, %v253
        %v1943 = vadd.f32 %v1927, %v254
        %v1944 = vadd.f32 %v1928, %v255
        %v1945 = vadd.f32 %v1929, %v256
        %v1946 = vadd.f32 %v1930, %v257
        %v1947 = vadd.f32 %v1931, %v258
        %v1948 = vadd.f32 %v1932, %v259
        %v1949 = vadd.f32 %v1933, %v260
        %v1950 = vadd.f32 %v1934, %v261
        %v1951 = vadd.f32 %v1935, %v262
        %v1952 = vadd.f32 %v1936, %v263
        %v1953 = vadd.f32 %v1937, %v264
        %v1954 = vadd.f32 %v1938, %v265
        %v1955 = vadd.f32 %v1939, %v266
        %v1956 = vadd.f32 %v1940, %v267
        %v1957 = vadd.f32 %v1941, %v268
        %v1958 = vmul.f32 %v1942, 0.5
        %v1959 = vmul.f32 %v1943, 0.5
        %v1960 = vmul.f32 %v1944, 0.5
        %v1961 = vmul.f32 %v1945, 0.5
        %v1962 = vmul.f32 %v1946, 0.5
        %v1963 = vmul.f32 %v1947, 0.5
        %v1964 = vmul.f32 %v1948, 0.5
        %v1965 = vmul.f32 %v1949, 0.5
        %v1966 = vmul.f32 %v1950, 0.5
        %v1967 = vmul.f32 %v1951, 0.5
        %v1968 = vmul.f32 %v1952, 0.5
        %v1969 = vmul.f32 %v1953, 0.5
        %v1970 = vmul.f32 %v1954, 0.5
        %v1971 = vmul.f32 %v1955, 0.5
        %v1972 = vmul.f32 %v1956, 0.5
        %v1973 = vmul.f32 %v1957, 0.5
        %v1974 = vtanh.pop %v1958
        %v1975 = vtanh.pop %v1959
        %v1976 = vtanh.pop %v1960
        %v1977 = vtanh.pop %v1961
        %v1978 = vtanh.pop %v1962
        %v1979 = vtanh.pop %v1963
        %v1980 = vtanh.pop %v1964
        %v1981 = vtanh.pop %v1965
        %v1982 = vtanh.pop %v1966
        %v1983 = vtanh.pop %v1967
        %v1984 = vtanh.pop %v1968
        %v1985 = vtanh.pop %v1969
        %v1986 = vtanh.pop %v1970
        %v1987 = vtanh.pop %v1971
        %v1988 = vtanh.pop %v1972
        %v1989 = vtanh.pop %v1973
        %v1990 = vand.u32 2147483647, %v1974
        %v1991 = vand.u32 2147483647, %v1975
        %v1992 = vand.u32 2147483647, %v1976
        %v1993 = vand.u32 2147483647, %v1977
        %v1994 = vand.u32 2147483647, %v1978
        %v1995 = vand.u32 2147483647, %v1979
        %v1996 = vand.u32 2147483647, %v1980
        %v1997 = vand.u32 2147483647, %v1981
        %v1998 = vand.u32 2147483647, %v1982
        %v1999 = vand.u32 2147483647, %v1983
        %v2000 = vand.u32 2147483647, %v1984
        %v2001 = vand.u32 2147483647, %v1985
        %v2002 = vand.u32 2147483647, %v1986
        %v2003 = vand.u32 2147483647, %v1987
        %v2004 = vand.u32 2147483647, %v1988
        %v2005 = vand.u32 2147483647, %v1989
        %v2006 = vmax.f32 %v1990, 1e-12
        %v2007 = vmax.f32 %v1991, 1e-12
        %v2008 = vmax.f32 %v1992, 1e-12
        %v2009 = vmax.f32 %v1993, 1e-12
        %v2010 = vmax.f32 %v1994, 1e-12
        %v2011 = vmax.f32 %v1995, 1e-12
        %v2012 = vmax.f32 %v1996, 1e-12
        %v2013 = vmax.f32 %v1997, 1e-12
        %v2014 = vmax.f32 %v1998, 1e-12
        %v2015 = vmax.f32 %v1999, 1e-12
        %v2016 = vmax.f32 %v2000, 1e-12
        %v2017 = vmax.f32 %v2001, 1e-12
        %v2018 = vmax.f32 %v2002, 1e-12
        %v2019 = vmax.f32 %v2003, 1e-12
        %v2020 = vmax.f32 %v2004, 1e-12
        %v2021 = vmax.f32 %v2005, 1e-12
        %vm2022 = vcmp.ge.f32.partialorder %v1974, 0.0
        %vm2023 = vcmp.ge.f32.partialorder %v1975, 0.0
        %vm2024 = vcmp.ge.f32.partialorder %v1976, 0.0
        %vm2025 = vcmp.ge.f32.partialorder %v1977, 0.0
        %vm2026 = vcmp.ge.f32.partialorder %v1978, 0.0
        %vm2027 = vcmp.ge.f32.partialorder %v1979, 0.0
        %vm2028 = vcmp.ge.f32.partialorder %v1980, 0.0
        %vm2029 = vcmp.ge.f32.partialorder %v1981, 0.0
        %vm2030 = vcmp.ge.f32.partialorder %v1982, 0.0
        %vm2031 = vcmp.ge.f32.partialorder %v1983, 0.0
        %vm2032 = vcmp.ge.f32.partialorder %v1984, 0.0
        %vm2033 = vcmp.ge.f32.partialorder %v1985, 0.0
        %vm2034 = vcmp.ge.f32.partialorder %v1986, 0.0
        %vm2035 = vcmp.ge.f32.partialorder %v1987, 0.0
        %vm2036 = vcmp.ge.f32.partialorder %v1988, 0.0
        %vm2037 = vcmp.ge.f32.partialorder %v1989, 0.0
        %v2038 = vsub.f32 0.0, %v2006
        %v2039 = vsub.f32 0.0, %v2007
        %v2040 = vsub.f32 0.0, %v2008
        %v2041 = vsub.f32 0.0, %v2009
        %v2042 = vsub.f32 0.0, %v2010
        %v2043 = vsub.f32 0.0, %v2011
        %v2044 = vsub.f32 0.0, %v2012
        %v2045 = vsub.f32 0.0, %v2013
        %v2046 = vsub.f32 0.0, %v2014
        %v2047 = vsub.f32 0.0, %v2015
        %v2048 = vsub.f32 0.0, %v2016
        %v2049 = vsub.f32 0.0, %v2017
        %v2050 = vsub.f32 0.0, %v2018
        %v2051 = vsub.f32 0.0, %v2019
        %v2052 = vsub.f32 0.0, %v2020
        %v2053 = vsub.f32 0.0, %v2021
        %v2054 = vsel %vm2022, %v2006, %v2038
        %v2055 = vsel %vm2023, %v2007, %v2039
        %v2056 = vsel %vm2024, %v2008, %v2040
        %v2057 = vsel %vm2025, %v2009, %v2041
        %v2058 = vsel %vm2026, %v2010, %v2042
        %v2059 = vsel %vm2027, %v2011, %v2043
        %v2060 = vsel %vm2028, %v2012, %v2044
        %v2061 = vsel %vm2029, %v2013, %v2045
        %v2062 = vsel %vm2030, %v2014, %v2046
        %v2063 = vsel %vm2031, %v2015, %v2047
        %v2064 = vsel %vm2032, %v2016, %v2048
        %v2065 = vsel %vm2033, %v2017, %v2049
        %v2066 = vsel %vm2034, %v2018, %v2050
        %v2067 = vsel %vm2035, %v2019, %v2051
        %v2068 = vsel %vm2036, %v2020, %v2052
        %v2069 = vsel %vm2037, %v2021, %v2053
        %v2070 = vsel %vm381, %v2054, 1.0
        %v2071 = vsel %vm382, %v2055, 1.0
        %v2072 = vsel %vm383, %v2056, 1.0
        %v2073 = vsel %vm384, %v2057, 1.0
        %v2074 = vsel %vm385, %v2058, 1.0
        %v2075 = vsel %vm386, %v2059, 1.0
        %v2076 = vsel %vm387, %v2060, 1.0
        %v2077 = vsel %vm388, %v2061, 1.0
        %v2078 = vsel %vm389, %v2062, 1.0
        %v2079 = vsel %vm390, %v2063, 1.0
        %v2080 = vsel %vm391, %v2064, 1.0
        %v2081 = vsel %vm392, %v2065, 1.0
        %v2082 = vsel %vm393, %v2066, 1.0
        %v2083 = vsel %vm394, %v2067, 1.0
        %v2084 = vsel %vm395, %v2068, 1.0
        %v2085 = vsel %vm396, %v2069, 1.0
        %v2086 = vmul.f32 %v2070, %v2078
        %v2087 = vmul.f32 %v2071, %v2079
        %v2088 = vmul.f32 %v2072, %v2080
        %v2089 = vmul.f32 %v2073, %v2081
        %v2090 = vmul.f32 %v2074, %v2082
        %v2091 = vmul.f32 %v2075, %v2083
        %v2092 = vmul.f32 %v2076, %v2084
        %v2093 = vmul.f32 %v2077, %v2085
        %v2094 = vmul.f32 %v2086, %v2090
        %v2095 = vmul.f32 %v2087, %v2091
        %v2096 = vmul.f32 %v2088, %v2092
        %v2097 = vmul.f32 %v2089, %v2093
        %v2098 = vmul.f32 %v2094, %v2096
        %v2099 = vmul.f32 %v2095, %v2097
        %v2100 = vmul.f32 %v2098, %v2099
        %v2101 = vadd.f32 %v2070, %v2100
        %v2102 = vadd.f32 %v2071, %v2100
        %v2103 = vadd.f32 %v2072, %v2100
        %v2104 = vadd.f32 %v2073, %v2100
        %v2105 = vadd.f32 %v2074, %v2100
        %v2106 = vadd.f32 %v2075, %v2100
        %v2107 = vadd.f32 %v2076, %v2100
        %v2108 = vadd.f32 %v2077, %v2100
        %v2109 = vadd.f32 %v2078, %v2100
        %v2110 = vadd.f32 %v2079, %v2100
        %v2111 = vadd.f32 %v2080, %v2100
        %v2112 = vadd.f32 %v2081, %v2100
        %v2113 = vadd.f32 %v2082, %v2100
        %v2114 = vadd.f32 %v2083, %v2100
        %v2115 = vadd.f32 %v2084, %v2100
        %v2116 = vadd.f32 %v2085, %v2100
        %v2117 = vsub.f32 %v2070, %v2100
        %v2118 = vsub.f32 %v2071, %v2100
        %v2119 = vsub.f32 %v2072, %v2100
        %v2120 = vsub.f32 %v2073, %v2100
        %v2121 = vsub.f32 %v2074, %v2100
        %v2122 = vsub.f32 %v2075, %v2100
        %v2123 = vsub.f32 %v2076, %v2100
        %v2124 = vsub.f32 %v2077, %v2100
        %v2125 = vsub.f32 %v2078, %v2100
        %v2126 = vsub.f32 %v2079, %v2100
        %v2127 = vsub.f32 %v2080, %v2100
        %v2128 = vsub.f32 %v2081, %v2100
        %v2129 = vsub.f32 %v2082, %v2100
        %v2130 = vsub.f32 %v2083, %v2100
        %v2131 = vsub.f32 %v2084, %v2100
        %v2132 = vsub.f32 %v2085, %v2100
        %v2133 = vand.u32 2147483647, %v2117
        %v2134 = vand.u32 2147483647, %v2118
        %v2135 = vand.u32 2147483647, %v2119
        %v2136 = vand.u32 2147483647, %v2120
        %v2137 = vand.u32 2147483647, %v2121
        %v2138 = vand.u32 2147483647, %v2122
        %v2139 = vand.u32 2147483647, %v2123
        %v2140 = vand.u32 2147483647, %v2124
        %v2141 = vand.u32 2147483647, %v2125
        %v2142 = vand.u32 2147483647, %v2126
        %v2143 = vand.u32 2147483647, %v2127
        %v2144 = vand.u32 2147483647, %v2128
        %v2145 = vand.u32 2147483647, %v2129
        %v2146 = vand.u32 2147483647, %v2130
        %v2147 = vand.u32 2147483647, %v2131
        %v2148 = vand.u32 2147483647, %v2132
        %v2149 = vmax.f32 %v2133, 1e-12
        %v2150 = vmax.f32 %v2134, 1e-12
        %v2151 = vmax.f32 %v2135, 1e-12
        %v2152 = vmax.f32 %v2136, 1e-12
        %v2153 = vmax.f32 %v2137, 1e-12
        %v2154 = vmax.f32 %v2138, 1e-12
        %v2155 = vmax.f32 %v2139, 1e-12
        %v2156 = vmax.f32 %v2140, 1e-12
        %v2157 = vmax.f32 %v2141, 1e-12
        %v2158 = vmax.f32 %v2142, 1e-12
        %v2159 = vmax.f32 %v2143, 1e-12
        %v2160 = vmax.f32 %v2144, 1e-12
        %v2161 = vmax.f32 %v2145, 1e-12
        %v2162 = vmax.f32 %v2146, 1e-12
        %v2163 = vmax.f32 %v2147, 1e-12
        %v2164 = vmax.f32 %v2148, 1e-12
        %vm2165 = vcmp.ge.f32.partialorder %v2117, 0.0
        %vm2166 = vcmp.ge.f32.partialorder %v2118, 0.0
        %vm2167 = vcmp.ge.f32.partialorder %v2119, 0.0
        %vm2168 = vcmp.ge.f32.partialorder %v2120, 0.0
        %vm2169 = vcmp.ge.f32.partialorder %v2121, 0.0
        %vm2170 = vcmp.ge.f32.partialorder %v2122, 0.0
        %vm2171 = vcmp.ge.f32.partialorder %v2123, 0.0
        %vm2172 = vcmp.ge.f32.partialorder %v2124, 0.0
        %vm2173 = vcmp.ge.f32.partialorder %v2125, 0.0
        %vm2174 = vcmp.ge.f32.partialorder %v2126, 0.0
        %vm2175 = vcmp.ge.f32.partialorder %v2127, 0.0
        %vm2176 = vcmp.ge.f32.partialorder %v2128, 0.0
        %vm2177 = vcmp.ge.f32.partialorder %v2129, 0.0
        %vm2178 = vcmp.ge.f32.partialorder %v2130, 0.0
        %vm2179 = vcmp.ge.f32.partialorder %v2131, 0.0
        %vm2180 = vcmp.ge.f32.partialorder %v2132, 0.0
        %v2181 = vsub.f32 0.0, %v2149
        %v2182 = vsub.f32 0.0, %v2150
        %v2183 = vsub.f32 0.0, %v2151
        %v2184 = vsub.f32 0.0, %v2152
        %v2185 = vsub.f32 0.0, %v2153
        %v2186 = vsub.f32 0.0, %v2154
        %v2187 = vsub.f32 0.0, %v2155
        %v2188 = vsub.f32 0.0, %v2156
        %v2189 = vsub.f32 0.0, %v2157
        %v2190 = vsub.f32 0.0, %v2158
        %v2191 = vsub.f32 0.0, %v2159
        %v2192 = vsub.f32 0.0, %v2160
        %v2193 = vsub.f32 0.0, %v2161
        %v2194 = vsub.f32 0.0, %v2162
        %v2195 = vsub.f32 0.0, %v2163
        %v2196 = vsub.f32 0.0, %v2164
        %v2197 = vsel %vm2165, %v2149, %v2181
        %v2198 = vsel %vm2166, %v2150, %v2182
        %v2199 = vsel %vm2167, %v2151, %v2183
        %v2200 = vsel %vm2168, %v2152, %v2184
        %v2201 = vsel %vm2169, %v2153, %v2185
        %v2202 = vsel %vm2170, %v2154, %v2186
        %v2203 = vsel %vm2171, %v2155, %v2187
        %v2204 = vsel %vm2172, %v2156, %v2188
        %v2205 = vsel %vm2173, %v2157, %v2189
        %v2206 = vsel %vm2174, %v2158, %v2190
        %v2207 = vsel %vm2175, %v2159, %v2191
        %v2208 = vsel %vm2176, %v2160, %v2192
        %v2209 = vsel %vm2177, %v2161, %v2193
        %v2210 = vsel %vm2178, %v2162, %v2194
        %v2211 = vsel %vm2179, %v2163, %v2195
        %v2212 = vsel %vm2180, %v2164, %v2196
        %v2213 = vrcp.pop %v2197
        %v2214 = vrcp.pop %v2198
        %v2215 = vrcp.pop %v2199
        %v2216 = vrcp.pop %v2200
        %v2217 = vrcp.pop %v2201
        %v2218 = vrcp.pop %v2202
        %v2219 = vrcp.pop %v2203
        %v2220 = vrcp.pop %v2204
        %v2221 = vrcp.pop %v2205
        %v2222 = vrcp.pop %v2206
        %v2223 = vrcp.pop %v2207
        %v2224 = vrcp.pop %v2208
        %v2225 = vrcp.pop %v2209
        %v2226 = vrcp.pop %v2210
        %v2227 = vrcp.pop %v2211
        %v2228 = vrcp.pop %v2212
        %v2229 = vmul.f32 %v2101, %v2213
        %v2230 = vmul.f32 %v2102, %v2214
        %v2231 = vmul.f32 %v2103, %v2215
        %v2232 = vmul.f32 %v2104, %v2216
        %v2233 = vmul.f32 %v2105, %v2217
        %v2234 = vmul.f32 %v2106, %v2218
        %v2235 = vmul.f32 %v2107, %v2219
        %v2236 = vmul.f32 %v2108, %v2220
        %v2237 = vmul.f32 %v2109, %v2221
        %v2238 = vmul.f32 %v2110, %v2222
        %v2239 = vmul.f32 %v2111, %v2223
        %v2240 = vmul.f32 %v2112, %v2224
        %v2241 = vmul.f32 %v2113, %v2225
        %v2242 = vmul.f32 %v2114, %v2226
        %v2243 = vmul.f32 %v2115, %v2227
        %v2244 = vmul.f32 %v2116, %v2228
        %v2245 = vmax.f32 %v2229, 5.0000004e-08
        %v2246 = vmax.f32 %v2230, 5.0000004e-08
        %v2247 = vmax.f32 %v2231, 5.0000004e-08
        %v2248 = vmax.f32 %v2232, 5.0000004e-08
        %v2249 = vmax.f32 %v2233, 5.0000004e-08
        %v2250 = vmax.f32 %v2234, 5.0000004e-08
        %v2251 = vmax.f32 %v2235, 5.0000004e-08
        %v2252 = vmax.f32 %v2236, 5.0000004e-08
        %v2253 = vmax.f32 %v2237, 5.0000004e-08
        %v2254 = vmax.f32 %v2238, 5.0000004e-08
        %v2255 = vmax.f32 %v2239, 5.0000004e-08
        %v2256 = vmax.f32 %v2240, 5.0000004e-08
        %v2257 = vmax.f32 %v2241, 5.0000004e-08
        %v2258 = vmax.f32 %v2242, 5.0000004e-08
        %v2259 = vmax.f32 %v2243, 5.0000004e-08
        %v2260 = vmax.f32 %v2244, 5.0000004e-08
        %v2261 = vmin.f32 %v2245, 20000000.0
        %v2262 = vmin.f32 %v2246, 20000000.0
        %v2263 = vmin.f32 %v2247, 20000000.0
        %v2264 = vmin.f32 %v2248, 20000000.0
        %v2265 = vmin.f32 %v2249, 20000000.0
        %v2266 = vmin.f32 %v2250, 20000000.0
        %v2267 = vmin.f32 %v2251, 20000000.0
        %v2268 = vmin.f32 %v2252, 20000000.0
        %v2269 = vmin.f32 %v2253, 20000000.0
        %v2270 = vmin.f32 %v2254, 20000000.0
        %v2271 = vmin.f32 %v2255, 20000000.0
        %v2272 = vmin.f32 %v2256, 20000000.0
        %v2273 = vmin.f32 %v2257, 20000000.0
        %v2274 = vmin.f32 %v2258, 20000000.0
        %v2275 = vmin.f32 %v2259, 20000000.0
        %v2276 = vmin.f32 %v2260, 20000000.0
        %v2277 = vlog2.pop %v2261
        %v2278 = vmul.f32 %v2277, 0.6931472
        %v2279 = vlog2.pop %v2262
        %v2280 = vmul.f32 %v2279, 0.6931472
        %v2281 = vlog2.pop %v2263
        %v2282 = vmul.f32 %v2281, 0.6931472
        %v2283 = vlog2.pop %v2264
        %v2284 = vmul.f32 %v2283, 0.6931472
        %v2285 = vlog2.pop %v2265
        %v2286 = vmul.f32 %v2285, 0.6931472
        %v2287 = vlog2.pop %v2266
        %v2288 = vmul.f32 %v2287, 0.6931472
        %v2289 = vlog2.pop %v2267
        %v2290 = vmul.f32 %v2289, 0.6931472
        %v2291 = vlog2.pop %v2268
        %v2292 = vmul.f32 %v2291, 0.6931472
        %v2293 = vlog2.pop %v2269
        %v2294 = vmul.f32 %v2293, 0.6931472
        %v2295 = vlog2.pop %v2270
        %v2296 = vmul.f32 %v2295, 0.6931472
        %v2297 = vlog2.pop %v2271
        %v2298 = vmul.f32 %v2297, 0.6931472
        %v2299 = vlog2.pop %v2272
        %v2300 = vmul.f32 %v2299, 0.6931472
        %v2301 = vlog2.pop %v2273
        %v2302 = vmul.f32 %v2301, 0.6931472
        %v2303 = vlog2.pop %v2274
        %v2304 = vmul.f32 %v2303, 0.6931472
        %v2305 = vlog2.pop %v2275
        %v2306 = vmul.f32 %v2305, 0.6931472
        %v2307 = vlog2.pop %v2276
        %v2308 = vmul.f32 %v2307, 0.6931472
        %s2309 = scalar_lea.vmem %s3, 256
        %v2310 = vld [vmem:[%s2309] sm:$0xff]
        %v2311 = vld [vmem:[%s2309 + $0x8] sm:$0xff]
        %v2312 = vld [vmem:[%s2309 + $0x10] sm:$0xff]
        %v2313 = vld [vmem:[%s2309 + $0x18] sm:$0xff]
        %v2314 = vld [vmem:[%s2309 + $0x20] sm:$0xff]
        %v2315 = vld [vmem:[%s2309 + $0x28] sm:$0xff]
        %v2316 = vld [vmem:[%s2309 + $0x30] sm:$0xff]
        %v2317 = vld [vmem:[%s2309 + $0x38] sm:$0xff]
        %v2318 = vld [vmem:[%s2309 + $0x40] sm:$0xff]
        %v2319 = vld [vmem:[%s2309 + $0x48] sm:$0xff]
        %v2320 = vld [vmem:[%s2309 + $0x50] sm:$0xff]
        %v2321 = vld [vmem:[%s2309 + $0x58] sm:$0xff]
        %v2322 = vld [vmem:[%s2309 + $0x60] sm:$0xff]
        %v2323 = vld [vmem:[%s2309 + $0x68] sm:$0xff]
        %v2324 = vld [vmem:[%s2309 + $0x70] sm:$0xff]
        %v2325 = vld [vmem:[%s2309 + $0x78] sm:$0xff]
        %2327 = vset.pattern.permute.xlu0 0
        %2328 = vperm.xlu0 %2327, %v2310
        %v2329 = vpop.permute.xlu0 %2328
        %2332 = vset.pattern.permute.xlu0 0
        %2333 = vperm.xlu0 %2332, %v2311
        %v2334 = vpop.permute.xlu0 %2333
        %2337 = vset.pattern.permute.xlu0 0
        %2338 = vperm.xlu0 %2337, %v2312
        %v2339 = vpop.permute.xlu0 %2338
        %2342 = vset.pattern.permute.xlu0 0
        %2343 = vperm.xlu0 %2342, %v2313
        %v2344 = vpop.permute.xlu0 %2343
        %2347 = vset.pattern.permute.xlu0 0
        %2348 = vperm.xlu0 %2347, %v2314
        %v2349 = vpop.permute.xlu0 %2348
        %2352 = vset.pattern.permute.xlu0 0
        %2353 = vperm.xlu0 %2352, %v2315
        %v2354 = vpop.permute.xlu0 %2353
        %2357 = vset.pattern.permute.xlu0 0
        %2358 = vperm.xlu0 %2357, %v2316
        %v2359 = vpop.permute.xlu0 %2358
        %2362 = vset.pattern.permute.xlu0 0
        %2363 = vperm.xlu0 %2362, %v2317
        %v2364 = vpop.permute.xlu0 %2363
        %2367 = vset.pattern.permute.xlu0 0
        %2368 = vperm.xlu0 %2367, %v2318
        %v2369 = vpop.permute.xlu0 %2368
        %2372 = vset.pattern.permute.xlu0 0
        %2373 = vperm.xlu0 %2372, %v2319
        %v2374 = vpop.permute.xlu0 %2373
        %2377 = vset.pattern.permute.xlu0 0
        %2378 = vperm.xlu0 %2377, %v2320
        %v2379 = vpop.permute.xlu0 %2378
        %2382 = vset.pattern.permute.xlu0 0
        %2383 = vperm.xlu0 %2382, %v2321
        %v2384 = vpop.permute.xlu0 %2383
        %2387 = vset.pattern.permute.xlu0 0
        %2388 = vperm.xlu0 %2387, %v2322
        %v2389 = vpop.permute.xlu0 %2388
        %2392 = vset.pattern.permute.xlu0 0
        %2393 = vperm.xlu0 %2392, %v2323
        %v2394 = vpop.permute.xlu0 %2393
        %2397 = vset.pattern.permute.xlu0 0
        %2398 = vperm.xlu0 %2397, %v2324
        %v2399 = vpop.permute.xlu0 %2398
        %2402 = vset.pattern.permute.xlu0 0
        %2403 = vperm.xlu0 %2402, %v2325
        %v2404 = vpop.permute.xlu0 %2403
        %v2406 = vmul.f32 %v2278, %v2329
        %v2407 = vmul.f32 %v2280, %v2334
        %v2408 = vmul.f32 %v2282, %v2339
        %v2409 = vmul.f32 %v2284, %v2344
        %v2410 = vmul.f32 %v2286, %v2349
        %v2411 = vmul.f32 %v2288, %v2354
        %v2412 = vmul.f32 %v2290, %v2359
        %v2413 = vmul.f32 %v2292, %v2364
        %v2414 = vmul.f32 %v2294, %v2369
        %v2415 = vmul.f32 %v2296, %v2374
        %v2416 = vmul.f32 %v2298, %v2379
        %v2417 = vmul.f32 %v2300, %v2384
        %v2418 = vmul.f32 %v2302, %v2389
        %v2419 = vmul.f32 %v2304, %v2394
        %v2420 = vmul.f32 %v2306, %v2399
        %v2421 = vmul.f32 %v2308, %v2404
        %v2422 = vrot.slane %v2406, 4
        %v2423 = vadd.f32 %v2406, %v2422
        %v2424 = vrot.slane %v2423, 2
        %v2425 = vadd.f32 %v2423, %v2424
        %v2426 = vrot.slane %v2425, 1
        %v2427 = vadd.f32 %v2425, %v2426
        %v2428 = vrot.slane %v2407, 4
        %v2429 = vadd.f32 %v2407, %v2428
        %v2430 = vrot.slane %v2429, 2
        %v2431 = vadd.f32 %v2429, %v2430
        %v2432 = vrot.slane %v2431, 1
        %v2433 = vadd.f32 %v2431, %v2432
        %v2434 = vrot.slane %v2408, 4
        %v2435 = vadd.f32 %v2408, %v2434
        %v2436 = vrot.slane %v2435, 2
        %v2437 = vadd.f32 %v2435, %v2436
        %v2438 = vrot.slane %v2437, 1
        %v2439 = vadd.f32 %v2437, %v2438
        %v2440 = vrot.slane %v2409, 4
        %v2441 = vadd.f32 %v2409, %v2440
        %v2442 = vrot.slane %v2441, 2
        %v2443 = vadd.f32 %v2441, %v2442
        %v2444 = vrot.slane %v2443, 1
        %v2445 = vadd.f32 %v2443, %v2444
        %v2446 = vrot.slane %v2410, 4
        %v2447 = vadd.f32 %v2410, %v2446
        %v2448 = vrot.slane %v2447, 2
        %v2449 = vadd.f32 %v2447, %v2448
        %v2450 = vrot.slane %v2449, 1
        %v2451 = vadd.f32 %v2449, %v2450
        %v2452 = vrot.slane %v2411, 4
        %v2453 = vadd.f32 %v2411, %v2452
        %v2454 = vrot.slane %v2453, 2
        %v2455 = vadd.f32 %v2453, %v2454
        %v2456 = vrot.slane %v2455, 1
        %v2457 = vadd.f32 %v2455, %v2456
        %v2458 = vrot.slane %v2412, 4
        %v2459 = vadd.f32 %v2412, %v2458
        %v2460 = vrot.slane %v2459, 2
        %v2461 = vadd.f32 %v2459, %v2460
        %v2462 = vrot.slane %v2461, 1
        %v2463 = vadd.f32 %v2461, %v2462
        %v2464 = vrot.slane %v2413, 4
        %v2465 = vadd.f32 %v2413, %v2464
        %v2466 = vrot.slane %v2465, 2
        %v2467 = vadd.f32 %v2465, %v2466
        %v2468 = vrot.slane %v2467, 1
        %v2469 = vadd.f32 %v2467, %v2468
        %v2470 = vrot.slane %v2414, 4
        %v2471 = vadd.f32 %v2414, %v2470
        %v2472 = vrot.slane %v2471, 2
        %v2473 = vadd.f32 %v2471, %v2472
        %v2474 = vrot.slane %v2473, 1
        %v2475 = vadd.f32 %v2473, %v2474
        %v2476 = vrot.slane %v2415, 4
        %v2477 = vadd.f32 %v2415, %v2476
        %v2478 = vrot.slane %v2477, 2
        %v2479 = vadd.f32 %v2477, %v2478
        %v2480 = vrot.slane %v2479, 1
        %v2481 = vadd.f32 %v2479, %v2480
        %v2482 = vrot.slane %v2416, 4
        %v2483 = vadd.f32 %v2416, %v2482
        %v2484 = vrot.slane %v2483, 2
        %v2485 = vadd.f32 %v2483, %v2484
        %v2486 = vrot.slane %v2485, 1
        %v2487 = vadd.f32 %v2485, %v2486
        %v2488 = vrot.slane %v2417, 4
        %v2489 = vadd.f32 %v2417, %v2488
        %v2490 = vrot.slane %v2489, 2
        %v2491 = vadd.f32 %v2489, %v2490
        %v2492 = vrot.slane %v2491, 1
        %v2493 = vadd.f32 %v2491, %v2492
        %v2494 = vrot.slane %v2418, 4
        %v2495 = vadd.f32 %v2418, %v2494
        %v2496 = vrot.slane %v2495, 2
        %v2497 = vadd.f32 %v2495, %v2496
        %v2498 = vrot.slane %v2497, 1
        %v2499 = vadd.f32 %v2497, %v2498
        %v2500 = vrot.slane %v2419, 4
        %v2501 = vadd.f32 %v2419, %v2500
        %v2502 = vrot.slane %v2501, 2
        %v2503 = vadd.f32 %v2501, %v2502
        %v2504 = vrot.slane %v2503, 1
        %v2505 = vadd.f32 %v2503, %v2504
        %v2506 = vrot.slane %v2420, 4
        %v2507 = vadd.f32 %v2420, %v2506
        %v2508 = vrot.slane %v2507, 2
        %v2509 = vadd.f32 %v2507, %v2508
        %v2510 = vrot.slane %v2509, 1
        %v2511 = vadd.f32 %v2509, %v2510
        %v2512 = vrot.slane %v2421, 4
        %v2513 = vadd.f32 %v2421, %v2512
        %v2514 = vrot.slane %v2513, 2
        %v2515 = vadd.f32 %v2513, %v2514
        %v2516 = vrot.slane %v2515, 1
        %v2517 = vadd.f32 %v2515, %v2516
        %v2518 = vadd.f32 %v2427, %v235
        %v2519 = vadd.f32 %v2433, %v239
        %v2520 = vadd.f32 %v2439, %v240
        %v2521 = vadd.f32 %v2445, %v241
        %v2522 = vadd.f32 %v2451, %v242
        %v2523 = vadd.f32 %v2457, %v243
        %v2524 = vadd.f32 %v2463, %v244
        %v2525 = vadd.f32 %v2469, %v245
        %v2526 = vadd.f32 %v2475, %v236
        %v2527 = vadd.f32 %v2481, %v246
        %v2528 = vadd.f32 %v2487, %v247
        %v2529 = vadd.f32 %v2493, %v248
        %v2530 = vadd.f32 %v2499, %v249
        %v2531 = vadd.f32 %v2505, %v250
        %v2532 = vadd.f32 %v2511, %v251
        %v2533 = vadd.f32 %v2517, %v252
        %v2550 = vrot.slane %v2519, 7
        %v2551 = vsel %vm1005, %v2550, %v2518
        %v2552 = vrot.slane %v2520, 6
        %v2553 = vsel %vm1008, %v2552, %v2551
        %v2554 = vrot.slane %v2521, 5
        %v2555 = vsel %vm1011, %v2554, %v2553
        %v2556 = vrot.slane %v2522, 4
        %v2557 = vsel %vm1014, %v2556, %v2555
        %v2558 = vrot.slane %v2523, 3
        %v2559 = vsel %vm1017, %v2558, %v2557
        %v2560 = vrot.slane %v2524, 2
        %v2561 = vsel %vm1020, %v2560, %v2559
        %v2562 = vrot.slane %v2525, 1
        %v2563 = vsel %vm1023, %v2562, %v2561
        %v2564 = vrot.slane %v2527, 7
        %v2565 = vsel %vm1005, %v2564, %v2526
        %v2566 = vrot.slane %v2528, 6
        %v2567 = vsel %vm1008, %v2566, %v2565
        %v2568 = vrot.slane %v2529, 5
        %v2569 = vsel %vm1011, %v2568, %v2567
        %v2570 = vrot.slane %v2530, 4
        %v2571 = vsel %vm1014, %v2570, %v2569
        %v2572 = vrot.slane %v2531, 3
        %v2573 = vsel %vm1017, %v2572, %v2571
        %v2574 = vrot.slane %v2532, 2
        %v2575 = vsel %vm1020, %v2574, %v2573
        %v2576 = vrot.slane %v2533, 1
        %v2577 = vsel %vm1023, %v2576, %v2575
        %s2580 = scalar_lea.vmem %s234, 32 [#allocation3]
        %2581 = vst [vmem:[%s2580] sm:$0xff] %v2563
        %2582 = vst [vmem:[%s2580 + $0x8] sm:$0xff] %v2577
        %s2583 = sand.u32 %s115, 1
        %s2584 = scalar_lea.sflag [#allocation4], %s2583
        %s2585 = sand.u32 %s115, 1
        %s2586 = smul.addr %s2585, 48
        %s2587 = scalar_lea.vmem [#allocation3], %s2586
        // Predicated region
        $region75: #{tpu_custom_call.1} parent=69 // pred_check
          %p2588 = pneg %p125
        $region76: #{tpu_custom_call.1} parent=69 // pred_check_branch
          %2590 = sbr.rel (%p2588) target = $region78
        $region77: #{tpu_custom_call.1} parent=69 // pred_region
          %2592 = vsyncadd %s2584, 0
          %s2593 = smul.addr %s18, 8
          %s2594 = scalar_lea.hbm %s4, %s2593
          %s2595 = sshll.u32 %s2587, 4
          %s2596 = int_to_ptr.vmem [resolvable:$true] %s2595
          %s2597 = sshll.u32 %s2594, 4
          %s2598 = int_to_ptr.hbm [resolvable:$true] %s2597
          %2603 = dma.vmem_to_hbm [thread:$0]  %s2596, 768, %s2598, %s2584, 128, 256, 8
        $region78: #{tpu_custom_call.1} parent=69 // pred_fallthru
          _
      $region70: #{tpu_custom_call.1} parent=5 // pred_fallthru
        _
      %p2604 = scmp.le.s32.totalorder 2, %s13
      // Predicated region
      $region79: #{tpu_custom_call.1} parent=5 // pred_check
        %p2605 = pneg %p2604
      $region80: #{tpu_custom_call.1} parent=5 // pred_check_branch
        %2607 = sbr.rel (%p2605) target = $region82
      $region81: #{tpu_custom_call.1} parent=5 // pred_region
        %s2608 = ssub.s32 %s13, 2
        // Predicated region
        $region83: #{tpu_custom_call.1} parent=81 // pred_check
          %p2609 = pneg %p131
        $region84: #{tpu_custom_call.1} parent=81 // pred_check_branch
          %2611 = sbr.rel (%p2609) target = $region86
        $region85: #{tpu_custom_call.1} parent=81 // pred_region
          %s2612 = sand.u32 %s116, 1
          %s2613 = scalar_lea.sflag [#allocation4], %s2612
          %s2614 = sand.u32 %s116, 1
          %s2615 = smul.addr %s2614, 48
          %s2616 = scalar_lea.vmem [#allocation3], %s2615
          %2618 = dma.done %s2613, 768
        $region86: #{tpu_custom_call.1} parent=81 // pred_fallthru
          _
      $region82: #{tpu_custom_call.1} parent=5 // pred_fallthru
        _
    $region6: #{tpu_custom_call.1} parent=1 // loop_footer
      %s17 = sadd.s32 1, %s13
    $region7: #{tpu_custom_call.1} parent=1 // loop_footer_branch
      %12 = sbr.rel target = $region3
    $region8: #{tpu_custom_call.1} parent=1 // loop_exit
      _
    %2619 = vsyncpa [#allocation4], 1
    %s2620 = scalar_lea.sflag [#allocation4], 1
    %2621 = vsyncpa %s2620, 1

</llo_original>
